<compile_context>
chip_gen: v7x
topology: tpu7x:2x2x1
jax: 0.10.0
libtpu: 0.0.40
codegen_flags: <defaults>
</compile_context>

<pallas_src>
import math

import jax
import jax.numpy as jnp
from jax.experimental import pallas as pl
from jax.experimental.pallas import tpu as pltpu


# ---------------------------------------------------------------------------
# Fused Pallas kernel (all LogNetConvLayers + pred_out)
# ---------------------------------------------------------------------------

def make_fused_lognet_kernel(n_layers):
    """Build the fused kernel for a static number of layers.

    Ref order (all VMEM-resident, no grid):
      a_ref                               (N, N)       weighted adjacency
      per layer l (4 refs each):
        w_flat_ref   (F_in_l, C*F)        channel-packed weights
        b_flat_ref   (1, C*F)             channel-packed bias
        wfts_ref     (C*F, F)             tile(final.weight^T, (C,1))
        bf_ref       (1, F)               final.bias
      wpt_ref        (F, 128)             pred_out weight^T, zero-padded to 128 lanes
      bp_ref         (1, 128)             pred_out bias, zero-padded
      o_ref          (N, 128)             lane-dense padded output
    """

    def kernel(*refs):
        a_ref = refs[0]
        wpt_ref, bp_ref, o_ref = refs[-3], refs[-2], refs[-1]
        layer_refs = refs[1:-3]

        a = a_ref[...]

        # ---- layer 0: h = ones(N, 1)  =>  A @ h is just a row-sum of A ----
        w0_ref, b0_ref, wfts0_ref, bf0_ref = layer_refs[0:4]
        ah0 = jnp.sum(a, axis=1, keepdims=True)                        # (N, 1) XLU reduce
        # (N,1) * (1, C*F) broadcast == ah0 @ w_flat0 (no degenerate MXU op)
        r = jnp.maximum(ah0 * w0_ref[...] + b0_ref[...], 0.0)          # (N, C*F)
        # channel-sum fused into `final`:  r @ tile(Wf^T, C) == (sum_c r_c) @ Wf^T
        h = jnp.maximum(
            jnp.dot(r, wfts0_ref[...], preferred_element_type=jnp.float32)
            + bf0_ref[...],
            0.0,
        )                                                               # (N, F)

        # ---- layers 1 .. n_layers-1 (h stays on-chip the whole time) ----
        for l in range(1, n_layers):
            w_ref, b_ref, wfts_ref, bf_ref = layer_refs[4 * l:4 * l + 4]
            ah = jnp.dot(a, h, preferred_element_type=jnp.float32)     # (N, F)
            r = jnp.maximum(
                jnp.dot(ah, w_ref[...], preferred_element_type=jnp.float32)
                + b_ref[...],
                0.0,
            )                                                           # (N, C*F) lane-dense
            h = jnp.maximum(
                jnp.dot(r, wfts_ref[...], preferred_element_type=jnp.float32)
                + bf_ref[...],
                0.0,
            )                                                           # (N, F)

        # ---- pred_out (lane-dense, padded to 128 columns) ----
        o_ref[...] = (
            jnp.dot(h, wpt_ref[...], preferred_element_type=jnp.float32)
            + bp_ref[...]
        )

    return kernel


# ---------------------------------------------------------------------------
# Wrapper: single pallas_call for the whole forward pass
# ---------------------------------------------------------------------------

def _cost_estimate(n, n_layers, c, f, out_cols, n_bytes):
    cf = c * f
    flops = n * n                          # layer-0 row-sum
    flops += 2 * n * cf                    # layer-0 broadcast mul + bias
    flops += 2 * n * cf * f                # layer-0 final matmul
    flops += (n_layers - 1) * (2 * n * n * f + 2 * n * f * cf + 2 * n * cf * f)
    flops += 2 * n * f * out_cols          # pred_out
    return pl.CostEstimate(flops=flops, transcendentals=0, bytes_accessed=n_bytes)


def lognet_forward(adj, packed_layers, wpt_pad, bp_pad, n_output):
    n = adj.shape[0]
    out_cols = wpt_pad.shape[1]
    n_layers = len(packed_layers)
    num_channels_x_f = packed_layers[0]["w_flat"].shape[1]
    f = wpt_pad.shape[0]
    c = num_channels_x_f // f

    args = [adj]
    for p in packed_layers:
        args += [p["w_flat"], p["b_flat"], p["wft_stacked"], p["bf"]]
    args += [wpt_pad, bp_pad]

    n_bytes = sum(int(a.size) * 4 for a in args) + n * out_cols * 4
    vmem = pl.BlockSpec(memory_space=pltpu.MemorySpace.VMEM)

    out_pad = pl.pallas_call(
        make_fused_lognet_kernel(n_layers),
        out_shape=jax.ShapeDtypeStruct((n, out_cols), jnp.float32),
        in_specs=[vmem] * len(args),
        out_specs=vmem,
        cost_estimate=_cost_estimate(n, n_layers, c, f, out_cols, n_bytes),
    )(*args)
    return out_pad[:, :n_output]


lognet_forward_jit = jax.jit(lognet_forward, static_argnums=(4,))


# ---------------------------------------------------------------------------
# Parameter init (mirrors the PyTorch __init__ shapes) + lane-dense packing
# ---------------------------------------------------------------------------

def init_params(key, n_input, n_hidden, n_output, n_layers, num_channels):
    raw_layers, packed_layers = [], []
    in_f = n_input
    for _ in range(n_layers):
        key, k1, k2, k3, k4 = jax.random.split(key, 5)
        stdv = 1.0 / math.sqrt(n_hidden)   # 1/sqrt(weight.size(1)) == 1/sqrt(out_feats)
        w = jax.random.uniform(k1, (in_f, n_hidden, num_channels), jnp.float32, -stdv, stdv)
        b = jax.random.uniform(k2, (n_hidden, num_channels), jnp.float32, -stdv, stdv)
        s = 1.0 / math.sqrt(n_hidden)      # final = nn.Linear(n_hidden, n_hidden)
        wf = jax.random.uniform(k3, (n_hidden, n_hidden), jnp.float32, -s, s)   # (out, in)
        bf = jax.random.uniform(k4, (n_hidden,), jnp.float32, -s, s)
        raw_layers.append(dict(w=w, b=b, wf=wf, bf=bf))

        # Channel-packed lane-dense layouts:
        #   w_flat[:, c*F:(c+1)*F] == w[:, :, c]   ;   b_flat block c == b[:, c]
        w_flat = jnp.transpose(w, (0, 2, 1)).reshape(in_f, num_channels * n_hidden)
        b_flat = b.T.reshape(1, num_channels * n_hidden)
        # tile(Wf^T, (C,1)): r_packed @ wft_stacked == (sum_c r_c) @ Wf^T
        wft_stacked = jnp.tile(wf.T, (num_channels, 1))
        packed_layers.append(dict(w_flat=w_flat, b_flat=b_flat,
                                  wft_stacked=wft_stacked, bf=bf[None, :]))
        in_f = n_hidden

    key, k5, k6 = jax.random.split(key, 3)
    s = 1.0 / math.sqrt(n_hidden)          # pred_out = nn.Linear(n_hidden, n_output)
    wp = jax.random.uniform(k5, (n_output, n_hidden), jnp.float32, -s, s)
    bpv = jax.random.uniform(k6, (n_output,), jnp.float32, -s, s)

    # Zero-pad pred_out to 128 output lanes (lane-dense store; sliced outside).
    out_pad = 128
    wpt_pad = jnp.zeros((n_hidden, out_pad), jnp.float32).at[:, :n_output].set(wp.T)
    bp_pad = jnp.zeros((1, out_pad), jnp.float32).at[:, :n_output].set(bpv[None, :])

    return raw_layers, packed_layers, wpt_pad, bp_pad, wp, bpv


# ---------------------------------------------------------------------------
# Pure-jnp reference (per-channel loop, torch layouts) for correctness check
# ---------------------------------------------------------------------------

def lognet_forward_ref(adj, raw_layers, wp, bpv):
    n = adj.shape[0]
    h = jnp.ones((n, 1), jnp.float32)
    for p in raw_layers:
        ah = adj @ h
        acc = jnp.zeros((n, p["w"].shape[1]), jnp.float32)
        for c in range(p["w"].shape[2]):
            acc = acc + jnp.maximum(ah @ p["w"][:, :, c] + p["b"][:, c][None, :], 0.0)
        h = jnp.maximum(acc @ p["wf"].T + p["bf"][None, :], 0.0)
    return h @ wp.T + bpv[None, :]


# ---------------------------------------------------------------------------
# Main
# ---------------------------------------------------------------------------

if __name__ == "__main__":
    # Small synthetic graph / model sizes.
    N_NODES = 128        # multiple of 8; A columns lane-aligned
    N_INPUT = 1          # LogNet always starts from node_state = ones(N, 1)
    N_HIDDEN = 32
    N_OUTPUT = 8
    N_LAYERS = 3
    NUM_CHANNELS = 8     # C*F = 256 -> lane-dense packed matmul

    key = jax.random.PRNGKey(0)
    key, ka, km = jax.random.split(key, 3)

    # Dense weighted adjacency: random edge weights, ~50% sparsity, self loops,
    # rows normalized so activations stay O(1) across layers.
    weights = jax.random.uniform(ka, (N_NODES, N_NODES), jnp.float32, 0.0, 1.0)
    mask = (jax.random.uniform(km, (N_NODES, N_NODES)) < 0.5).astype(jnp.float32)
    adj = weights * mask + jnp.eye(N_NODES, dtype=jnp.float32)
    adj = adj / jnp.sum(adj, axis=1, keepdims=True)

    raw_layers, packed_layers, wpt_pad, bp_pad, wp, bpv = init_params(
        key, N_INPUT, N_HIDDEN, N_OUTPUT, N_LAYERS, NUM_CHANNELS
    )

    out = lognet_forward_jit(adj, packed_layers, wpt_pad, bp_pad, N_OUTPUT)
    out = jax.block_until_ready(out)

    with jax.default_matmul_precision("highest"):
        ref = lognet_forward_ref(adj, raw_layers, wp, bpv)
    ref = jax.block_until_ready(ref)

    assert out.shape == (N_NODES, N_OUTPUT)
    assert jnp.allclose(out, ref, rtol=1e-3, atol=1e-2), "mismatch vs jnp reference"

    print("KERNEL_OK")
</pallas_src>

<mosaic_0001>
module attributes {stable_mosaic.version = 11 : i64} {
  func.func @kernel(%arg0: memref<128x128xf32, #tpu.memory_space<vmem>>, %arg1: memref<1x256xf32, #tpu.memory_space<vmem>>, %arg2: memref<1x256xf32, #tpu.memory_space<vmem>>, %arg3: memref<256x32xf32, #tpu.memory_space<vmem>>, %arg4: memref<1x32xf32, #tpu.memory_space<vmem>>, %arg5: memref<32x256xf32, #tpu.memory_space<vmem>>, %arg6: memref<1x256xf32, #tpu.memory_space<vmem>>, %arg7: memref<256x32xf32, #tpu.memory_space<vmem>>, %arg8: memref<1x32xf32, #tpu.memory_space<vmem>>, %arg9: memref<32x256xf32, #tpu.memory_space<vmem>>, %arg10: memref<1x256xf32, #tpu.memory_space<vmem>>, %arg11: memref<256x32xf32, #tpu.memory_space<vmem>>, %arg12: memref<1x32xf32, #tpu.memory_space<vmem>>, %arg13: memref<32x128xf32, #tpu.memory_space<vmem>>, %arg14: memref<1x128xf32, #tpu.memory_space<vmem>>, %arg15: memref<128x128xf32, #tpu.memory_space<vmem>>) attributes {dimension_semantics = [], scalar_prefetch = 0 : i64, scratch_operands = 0 : i64, tpu.core_type = #tpu.core_type<tc>} {
    %c0 = arith.constant 0 : index
    %c0_0 = arith.constant 0 : index
    %0 = vector.load %arg0[%c0, %c0_0] : memref<128x128xf32, #tpu.memory_space<vmem>>, vector<128x128xf32>
    %cst = arith.constant dense<0.000000e+00> : vector<128xf32>
    %1 = vector.multi_reduction <add>, %0, %cst [1] : vector<128x128xf32> to vector<128xf32>
    %2 = vector.shape_cast %1 : vector<128xf32> to vector<128x1xf32>
    %c0_1 = arith.constant 0 : index
    %c0_2 = arith.constant 0 : index
    %3 = vector.load %arg1[%c0_1, %c0_2] : memref<1x256xf32, #tpu.memory_space<vmem>>, vector<1x256xf32>
    %4 = vector.broadcast %2 : vector<128x1xf32> to vector<128x256xf32>
    %5 = vector.broadcast %3 : vector<1x256xf32> to vector<128x256xf32>
    %6 = arith.mulf %4, %5 : vector<128x256xf32>
    %c0_3 = arith.constant 0 : index
    %c0_4 = arith.constant 0 : index
    %7 = vector.load %arg2[%c0_3, %c0_4] : memref<1x256xf32, #tpu.memory_space<vmem>>, vector<1x256xf32>
    %8 = vector.broadcast %7 : vector<1x256xf32> to vector<128x256xf32>
    %9 = arith.addf %6, %8 : vector<128x256xf32>
    %cst_5 = arith.constant 0.000000e+00 : f32
    %10 = vector.broadcast %cst_5 : f32 to vector<128x256xf32>
    %11 = arith.maximumf %9, %10 : vector<128x256xf32>
    %c0_6 = arith.constant 0 : index
    %c0_7 = arith.constant 0 : index
    %12 = vector.load %arg3[%c0_6, %c0_7] : memref<256x32xf32, #tpu.memory_space<vmem>>, vector<256x32xf32>
    %cst_8 = arith.constant dense<0.000000e+00> : vector<128x32xf32>
    %13 = tpu.matmul %11, %12, %cst_8 {dimension_numbers = #tpu.dot_dimension_numbers<[1], [0], [0], [1], [0, 0, 1, 1], [], []>} : vector<128x256xf32>, vector<256x32xf32>, vector<128x32xf32> -> vector<128x32xf32>
    %c0_9 = arith.constant 0 : index
    %c0_10 = arith.constant 0 : index
    %14 = vector.load %arg4[%c0_9, %c0_10] : memref<1x32xf32, #tpu.memory_space<vmem>>, vector<1x32xf32>
    %15 = vector.broadcast %14 : vector<1x32xf32> to vector<128x32xf32>
    %16 = arith.addf %13, %15 : vector<128x32xf32>
    %cst_11 = arith.constant 0.000000e+00 : f32
    %17 = vector.broadcast %cst_11 : f32 to vector<128x32xf32>
    %18 = arith.maximumf %16, %17 : vector<128x32xf32>
    %cst_12 = arith.constant dense<0.000000e+00> : vector<128x32xf32>
    %19 = tpu.matmul %0, %18, %cst_12 {dimension_numbers = #tpu.dot_dimension_numbers<[1], [0], [0], [1], [0, 0, 1, 1], [], []>} : vector<128x128xf32>, vector<128x32xf32>, vector<128x32xf32> -> vector<128x32xf32>
    %c0_13 = arith.constant 0 : index
    %c0_14 = arith.constant 0 : index
    %20 = vector.load %arg5[%c0_13, %c0_14] : memref<32x256xf32, #tpu.memory_space<vmem>>, vector<32x256xf32>
    %cst_15 = arith.constant dense<0.000000e+00> : vector<128x256xf32>
    %21 = tpu.matmul %19, %20, %cst_15 {dimension_numbers = #tpu.dot_dimension_numbers<[1], [0], [0], [1], [0, 0, 1, 1], [], []>} : vector<128x32xf32>, vector<32x256xf32>, vector<128x256xf32> -> vector<128x256xf32>
    %c0_16 = arith.constant 0 : index
    %c0_17 = arith.constant 0 : index
    %22 = vector.load %arg6[%c0_16, %c0_17] : memref<1x256xf32, #tpu.memory_space<vmem>>, vector<1x256xf32>
    %23 = vector.broadcast %22 : vector<1x256xf32> to vector<128x256xf32>
    %24 = arith.addf %21, %23 : vector<128x256xf32>
    %cst_18 = arith.constant 0.000000e+00 : f32
    %25 = vector.broadcast %cst_18 : f32 to vector<128x256xf32>
    %26 = arith.maximumf %24, %25 : vector<128x256xf32>
    %c0_19 = arith.constant 0 : index
    %c0_20 = arith.constant 0 : index
    %27 = vector.load %arg7[%c0_19, %c0_20] : memref<256x32xf32, #tpu.memory_space<vmem>>, vector<256x32xf32>
    %cst_21 = arith.constant dense<0.000000e+00> : vector<128x32xf32>
    %28 = tpu.matmul %26, %27, %cst_21 {dimension_numbers = #tpu.dot_dimension_numbers<[1], [0], [0], [1], [0, 0, 1, 1], [], []>} : vector<128x256xf32>, vector<256x32xf32>, vector<128x32xf32> -> vector<128x32xf32>
    %c0_22 = arith.constant 0 : index
    %c0_23 = arith.constant 0 : index
    %29 = vector.load %arg8[%c0_22, %c0_23] : memref<1x32xf32, #tpu.memory_space<vmem>>, vector<1x32xf32>
    %30 = vector.broadcast %29 : vector<1x32xf32> to vector<128x32xf32>
    %31 = arith.addf %28, %30 : vector<128x32xf32>
    %cst_24 = arith.constant 0.000000e+00 : f32
    %32 = vector.broadcast %cst_24 : f32 to vector<128x32xf32>
    %33 = arith.maximumf %31, %32 : vector<128x32xf32>
    %cst_25 = arith.constant dense<0.000000e+00> : vector<128x32xf32>
    %34 = tpu.matmul %0, %33, %cst_25 {dimension_numbers = #tpu.dot_dimension_numbers<[1], [0], [0], [1], [0, 0, 1, 1], [], []>} : vector<128x128xf32>, vector<128x32xf32>, vector<128x32xf32> -> vector<128x32xf32>
    %c0_26 = arith.constant 0 : index
    %c0_27 = arith.constant 0 : index
    %35 = vector.load %arg9[%c0_26, %c0_27] : memref<32x256xf32, #tpu.memory_space<vmem>>, vector<32x256xf32>
    %cst_28 = arith.constant dense<0.000000e+00> : vector<128x256xf32>
    %36 = tpu.matmul %34, %35, %cst_28 {dimension_numbers = #tpu.dot_dimension_numbers<[1], [0], [0], [1], [0, 0, 1, 1], [], []>} : vector<128x32xf32>, vector<32x256xf32>, vector<128x256xf32> -> vector<128x256xf32>
    %c0_29 = arith.constant 0 : index
    %c0_30 = arith.constant 0 : index
    %37 = vector.load %arg10[%c0_29, %c0_30] : memref<1x256xf32, #tpu.memory_space<vmem>>, vector<1x256xf32>
    %38 = vector.broadcast %37 : vector<1x256xf32> to vector<128x256xf32>
    %39 = arith.addf %36, %38 : vector<128x256xf32>
    %cst_31 = arith.constant 0.000000e+00 : f32
    %40 = vector.broadcast %cst_31 : f32 to vector<128x256xf32>
    %41 = arith.maximumf %39, %40 : vector<128x256xf32>
    %c0_32 = arith.constant 0 : index
    %c0_33 = arith.constant 0 : index
    %42 = vector.load %arg11[%c0_32, %c0_33] : memref<256x32xf32, #tpu.memory_space<vmem>>, vector<256x32xf32>
    %cst_34 = arith.constant dense<0.000000e+00> : vector<128x32xf32>
    %43 = tpu.matmul %41, %42, %cst_34 {dimension_numbers = #tpu.dot_dimension_numbers<[1], [0], [0], [1], [0, 0, 1, 1], [], []>} : vector<128x256xf32>, vector<256x32xf32>, vector<128x32xf32> -> vector<128x32xf32>
    %c0_35 = arith.constant 0 : index
    %c0_36 = arith.constant 0 : index
    %44 = vector.load %arg12[%c0_35, %c0_36] : memref<1x32xf32, #tpu.memory_space<vmem>>, vector<1x32xf32>
    %45 = vector.broadcast %44 : vector<1x32xf32> to vector<128x32xf32>
    %46 = arith.addf %43, %45 : vector<128x32xf32>
    %cst_37 = arith.constant 0.000000e+00 : f32
    %47 = vector.broadcast %cst_37 : f32 to vector<128x32xf32>
    %48 = arith.maximumf %46, %47 : vector<128x32xf32>
    %c0_38 = arith.constant 0 : index
    %c0_39 = arith.constant 0 : index
    %49 = vector.load %arg13[%c0_38, %c0_39] : memref<32x128xf32, #tpu.memory_space<vmem>>, vector<32x128xf32>
    %cst_40 = arith.constant dense<0.000000e+00> : vector<128x128xf32>
    %50 = tpu.matmul %48, %49, %cst_40 {dimension_numbers = #tpu.dot_dimension_numbers<[1], [0], [0], [1], [0, 0, 1, 1], [], []>} : vector<128x32xf32>, vector<32x128xf32>, vector<128x128xf32> -> vector<128x128xf32>
    %c0_41 = arith.constant 0 : index
    %c0_42 = arith.constant 0 : index
    %51 = vector.load %arg14[%c0_41, %c0_42] : memref<1x128xf32, #tpu.memory_space<vmem>>, vector<1x128xf32>
    %52 = vector.broadcast %51 : vector<1x128xf32> to vector<128x128xf32>
    %53 = arith.addf %50, %52 : vector<128x128xf32>
    %c0_43 = arith.constant 0 : index
    %c0_44 = arith.constant 0 : index
    %54 = vector.load %arg15[%c0_43, %c0_44] : memref<128x128xf32, #tpu.memory_space<vmem>>, vector<128x128xf32>
    tpu.vector_store %arg15[%c0_43, %c0_44], %53 {strides = array<i32>} : memref<128x128xf32, #tpu.memory_space<vmem>>, vector<128x128xf32>,
    return
  }
}

</mosaic_0001>

<llo_original>
// kernel: lognet_forward.1
$region0: #{lognet_forward.1}
  #allocation0 [shape = 'u32[]', space=smem, size = 0x4, offset = 0x4, fixed_abs, tag = 'smem constant byte address 0x4 - core index']
  #allocation1 [shape = 'u32[144,128]{1,0:T(1,128)}', space=vmem, size = 0x12000, scoped, tag = 'internal scratch']
  %s0 = inlined_call_operand.vmem [shape: f32[128,128], index: 0, kind: input, shape index: {}]
  %s1 = inlined_call_operand.vmem [shape: f32[1,256], index: 1, kind: input, shape index: {}]
  %s2 = inlined_call_operand.vmem [shape: f32[1,256], index: 2, kind: input, shape index: {}]
  %s3 = inlined_call_operand.vmem [shape: f32[256,32], index: 3, kind: input, shape index: {}]
  %s4 = inlined_call_operand.vmem [shape: f32[1,32], index: 4, kind: input, shape index: {}]
  %s5 = inlined_call_operand.vmem [shape: f32[32,256], index: 5, kind: input, shape index: {}]
  %s6 = inlined_call_operand.vmem [shape: f32[1,256], index: 6, kind: input, shape index: {}]
  %s7 = inlined_call_operand.vmem [shape: f32[256,32], index: 7, kind: input, shape index: {}]
  %s8 = inlined_call_operand.vmem [shape: f32[1,32], index: 8, kind: input, shape index: {}]
  %s9 = inlined_call_operand.vmem [shape: f32[32,256], index: 9, kind: input, shape index: {}]
  %s10 = inlined_call_operand.vmem [shape: f32[1,256], index: 10, kind: input, shape index: {}]
  %s11 = inlined_call_operand.vmem [shape: f32[256,32], index: 11, kind: input, shape index: {}]
  %s12 = inlined_call_operand.vmem [shape: f32[1,32], index: 12, kind: input, shape index: {}]
  %s13 = inlined_call_operand.vmem [shape: f32[32,128], index: 13, kind: input, shape index: {}]
  %s14 = inlined_call_operand.vmem [shape: f32[1,128], index: 14, kind: input, shape index: {}]
  %s15 = inlined_call_operand.vmem [shape: f32[128,128], index: 15, kind: output, shape index: {}]
  %s16 = sld [smem:[#allocation0]]
  $region70: #{lognet_forward.1} parent=0
    _
  %s18 = ssub.s32 1, %s16
  %s19 = scalar_select 0, %s18, %s16
  // Predicated region
  $region2: #{lognet_forward.1} parent=0 // pred_check
    _
  $region3: #{lognet_forward.1} parent=0 // pred_check_branch
    %21 = sbr.rel (0) target = $region5
  $region4: #{lognet_forward.1} parent=0 // pred_region
    _
  $region5: #{lognet_forward.1} parent=0 // pred_fallthru
    _
  // Predicated region
  $region6: #{lognet_forward.1} parent=0 // pred_check
    _
  $region7: #{lognet_forward.1} parent=0 // pred_check_branch
    %23 = sbr.rel (0) target = $region9
  $region8: #{lognet_forward.1} parent=0 // pred_region
    _
  $region9: #{lognet_forward.1} parent=0 // pred_fallthru
    _
  // Predicated region
  $region10: #{lognet_forward.1} parent=0 // pred_check
    _
  $region11: #{lognet_forward.1} parent=0 // pred_check_branch
    %25 = sbr.rel (0) target = $region13
  $region12: #{lognet_forward.1} parent=0 // pred_region
    _
  $region13: #{lognet_forward.1} parent=0 // pred_fallthru
    _
  // Predicated region
  $region14: #{lognet_forward.1} parent=0 // pred_check
    _
  $region15: #{lognet_forward.1} parent=0 // pred_check_branch
    %27 = sbr.rel (0) target = $region17
  $region16: #{lognet_forward.1} parent=0 // pred_region
    _
  $region17: #{lognet_forward.1} parent=0 // pred_fallthru
    _
  // Predicated region
  $region18: #{lognet_forward.1} parent=0 // pred_check
    _
  $region19: #{lognet_forward.1} parent=0 // pred_check_branch
    %29 = sbr.rel (0) target = $region21
  $region20: #{lognet_forward.1} parent=0 // pred_region
    _
  $region21: #{lognet_forward.1} parent=0 // pred_fallthru
    _
  // Predicated region
  $region22: #{lognet_forward.1} parent=0 // pred_check
    _
  $region23: #{lognet_forward.1} parent=0 // pred_check_branch
    %31 = sbr.rel (0) target = $region25
  $region24: #{lognet_forward.1} parent=0 // pred_region
    _
  $region25: #{lognet_forward.1} parent=0 // pred_fallthru
    _
  // Predicated region
  $region26: #{lognet_forward.1} parent=0 // pred_check
    _
  $region27: #{lognet_forward.1} parent=0 // pred_check_branch
    %33 = sbr.rel (0) target = $region29
  $region28: #{lognet_forward.1} parent=0 // pred_region
    _
  $region29: #{lognet_forward.1} parent=0 // pred_fallthru
    _
  // Predicated region
  $region30: #{lognet_forward.1} parent=0 // pred_check
    _
  $region31: #{lognet_forward.1} parent=0 // pred_check_branch
    %35 = sbr.rel (0) target = $region33
  $region32: #{lognet_forward.1} parent=0 // pred_region
    _
  $region33: #{lognet_forward.1} parent=0 // pred_fallthru
    _
  // Predicated region
  $region34: #{lognet_forward.1} parent=0 // pred_check
    _
  $region35: #{lognet_forward.1} parent=0 // pred_check_branch
    %37 = sbr.rel (0) target = $region37
  $region36: #{lognet_forward.1} parent=0 // pred_region
    _
  $region37: #{lognet_forward.1} parent=0 // pred_fallthru
    _
  // Predicated region
  $region38: #{lognet_forward.1} parent=0 // pred_check
    _
  $region39: #{lognet_forward.1} parent=0 // pred_check_branch
    %39 = sbr.rel (0) target = $region41
  $region40: #{lognet_forward.1} parent=0 // pred_region
    _
  $region41: #{lognet_forward.1} parent=0 // pred_fallthru
    _
  // Predicated region
  $region42: #{lognet_forward.1} parent=0 // pred_check
    _
  $region43: #{lognet_forward.1} parent=0 // pred_check_branch
    %41 = sbr.rel (0) target = $region45
  $region44: #{lognet_forward.1} parent=0 // pred_region
    _
  $region45: #{lognet_forward.1} parent=0 // pred_fallthru
    _
  // Predicated region
  $region46: #{lognet_forward.1} parent=0 // pred_check
    _
  $region47: #{lognet_forward.1} parent=0 // pred_check_branch
    %43 = sbr.rel (0) target = $region49
  $region48: #{lognet_forward.1} parent=0 // pred_region
    _
  $region49: #{lognet_forward.1} parent=0 // pred_fallthru
    _
  // Predicated region
  $region50: #{lognet_forward.1} parent=0 // pred_check
    _
  $region51: #{lognet_forward.1} parent=0 // pred_check_branch
    %45 = sbr.rel (0) target = $region53
  $region52: #{lognet_forward.1} parent=0 // pred_region
    _
  $region53: #{lognet_forward.1} parent=0 // pred_fallthru
    _
  // Predicated region
  $region54: #{lognet_forward.1} parent=0 // pred_check
    _
  $region55: #{lognet_forward.1} parent=0 // pred_check_branch
    %47 = sbr.rel (0) target = $region57
  $region56: #{lognet_forward.1} parent=0 // pred_region
    _
  $region57: #{lognet_forward.1} parent=0 // pred_fallthru
    _
  // Predicated region
  $region58: #{lognet_forward.1} parent=0 // pred_check
    _
  $region59: #{lognet_forward.1} parent=0 // pred_check_branch
    %49 = sbr.rel (0) target = $region61
  $region60: #{lognet_forward.1} parent=0 // pred_region
    _
  $region61: #{lognet_forward.1} parent=0 // pred_fallthru
    _
  %v50 = vld [vmem:[%s0] sm:$0xff]
  %v51 = vld [vmem:[%s0 + $0x8] sm:$0xff]
  %v52 = vld [vmem:[%s0 + $0x10] sm:$0xff]
  %v53 = vld [vmem:[%s0 + $0x18] sm:$0xff]
  %v54 = vld [vmem:[%s0 + $0x20] sm:$0xff]
  %v55 = vld [vmem:[%s0 + $0x28] sm:$0xff]
  %v56 = vld [vmem:[%s0 + $0x30] sm:$0xff]
  %v57 = vld [vmem:[%s0 + $0x38] sm:$0xff]
  %v58 = vld [vmem:[%s0 + $0x40] sm:$0xff]
  %v59 = vld [vmem:[%s0 + $0x48] sm:$0xff]
  %v60 = vld [vmem:[%s0 + $0x50] sm:$0xff]
  %v61 = vld [vmem:[%s0 + $0x58] sm:$0xff]
  %v62 = vld [vmem:[%s0 + $0x60] sm:$0xff]
  %v63 = vld [vmem:[%s0 + $0x68] sm:$0xff]
  %v64 = vld [vmem:[%s0 + $0x70] sm:$0xff]
  %v65 = vld [vmem:[%s0 + $0x78] sm:$0xff]
  %66 = vadd.xlane.f32.xlu0 %v50
  %v67 = vpop.xlane.xlu0 %66
  %68 = vadd.xlane.f32.xlu0 %v51
  %v69 = vpop.xlane.xlu0 %68
  %70 = vadd.xlane.f32.xlu0 %v52
  %v71 = vpop.xlane.xlu0 %70
  %72 = vadd.xlane.f32.xlu0 %v53
  %v73 = vpop.xlane.xlu0 %72
  %74 = vadd.xlane.f32.xlu0 %v54
  %v75 = vpop.xlane.xlu0 %74
  %76 = vadd.xlane.f32.xlu0 %v55
  %v77 = vpop.xlane.xlu0 %76
  %78 = vadd.xlane.f32.xlu0 %v56
  %v79 = vpop.xlane.xlu0 %78
  %80 = vadd.xlane.f32.xlu0 %v57
  %v81 = vpop.xlane.xlu0 %80
  %82 = vadd.xlane.f32.xlu0 %v58
  %v83 = vpop.xlane.xlu0 %82
  %84 = vadd.xlane.f32.xlu0 %v59
  %v85 = vpop.xlane.xlu0 %84
  %86 = vadd.xlane.f32.xlu0 %v60
  %v87 = vpop.xlane.xlu0 %86
  %88 = vadd.xlane.f32.xlu0 %v61
  %v89 = vpop.xlane.xlu0 %88
  %90 = vadd.xlane.f32.xlu0 %v62
  %v91 = vpop.xlane.xlu0 %90
  %92 = vadd.xlane.f32.xlu0 %v63
  %v93 = vpop.xlane.xlu0 %92
  %94 = vadd.xlane.f32.xlu0 %v64
  %v95 = vpop.xlane.xlu0 %94
  %96 = vadd.xlane.f32.xlu0 %v65
  %v97 = vpop.xlane.xlu0 %96
  %v98 = vld [vmem:[%s1] sm:$0x3]
  %v100 = vlaneseq
  %v101 = vshrl.u32 %v100, 7
  %v102 = vsub.s32 0, %v101
  %v103 = vrot.slane %v98, %v102
  %v104 = vlaneseq
  %v105 = vshrl.u32 %v104, 7
  %v106 = vsub.s32 1, %v105
  %v107 = vrot.slane %v98, %v106
  %v110 = vmul.f32 %v67, %v103
  %v111 = vmul.f32 %v67, %v107
  %v112 = vmul.f32 %v69, %v103
  %v113 = vmul.f32 %v69, %v107
  %v114 = vmul.f32 %v71, %v103
  %v115 = vmul.f32 %v71, %v107
  %v116 = vmul.f32 %v73, %v103
  %v117 = vmul.f32 %v73, %v107
  %v118 = vmul.f32 %v75, %v103
  %v119 = vmul.f32 %v75, %v107
  %v120 = vmul.f32 %v77, %v103
  %v121 = vmul.f32 %v77, %v107
  %v122 = vmul.f32 %v79, %v103
  %v123 = vmul.f32 %v79, %v107
  %v124 = vmul.f32 %v81, %v103
  %v125 = vmul.f32 %v81, %v107
  %v126 = vmul.f32 %v83, %v103
  %v127 = vmul.f32 %v83, %v107
  %v128 = vmul.f32 %v85, %v103
  %v129 = vmul.f32 %v85, %v107
  %v130 = vmul.f32 %v87, %v103
  %v131 = vmul.f32 %v87, %v107
  %v132 = vmul.f32 %v89, %v103
  %v133 = vmul.f32 %v89, %v107
  %v134 = vmul.f32 %v91, %v103
  %v135 = vmul.f32 %v91, %v107
  %v136 = vmul.f32 %v93, %v103
  %v137 = vmul.f32 %v93, %v107
  %v138 = vmul.f32 %v95, %v103
  %v139 = vmul.f32 %v95, %v107
  %v140 = vmul.f32 %v97, %v103
  %v141 = vmul.f32 %v97, %v107
  %v142 = vld [vmem:[%s2] sm:$0x3]
  %v144 = vlaneseq
  %v145 = vshrl.u32 %v144, 7
  %v146 = vsub.s32 0, %v145
  %v147 = vrot.slane %v142, %v146
  %v148 = vlaneseq
  %v149 = vshrl.u32 %v148, 7
  %v150 = vsub.s32 1, %v149
  %v151 = vrot.slane %v142, %v150
  %v154 = vadd.f32 %v110, %v147
  %v155 = vadd.f32 %v111, %v151
  %v156 = vadd.f32 %v112, %v147
  %v157 = vadd.f32 %v113, %v151
  %v158 = vadd.f32 %v114, %v147
  %v159 = vadd.f32 %v115, %v151
  %v160 = vadd.f32 %v116, %v147
  %v161 = vadd.f32 %v117, %v151
  %v162 = vadd.f32 %v118, %v147
  %v163 = vadd.f32 %v119, %v151
  %v164 = vadd.f32 %v120, %v147
  %v165 = vadd.f32 %v121, %v151
  %v166 = vadd.f32 %v122, %v147
  %v167 = vadd.f32 %v123, %v151
  %v168 = vadd.f32 %v124, %v147
  %v169 = vadd.f32 %v125, %v151
  %v170 = vadd.f32 %v126, %v147
  %v171 = vadd.f32 %v127, %v151
  %v172 = vadd.f32 %v128, %v147
  %v173 = vadd.f32 %v129, %v151
  %v174 = vadd.f32 %v130, %v147
  %v175 = vadd.f32 %v131, %v151
  %v176 = vadd.f32 %v132, %v147
  %v177 = vadd.f32 %v133, %v151
  %v178 = vadd.f32 %v134, %v147
  %v179 = vadd.f32 %v135, %v151
  %v180 = vadd.f32 %v136, %v147
  %v181 = vadd.f32 %v137, %v151
  %v182 = vadd.f32 %v138, %v147
  %v183 = vadd.f32 %v139, %v151
  %v184 = vadd.f32 %v140, %v147
  %v185 = vadd.f32 %v141, %v151
  %v186 = vmax.f32 %v154, 0.0
  %v187 = vmax.f32 %v155, 0.0
  %v188 = vmax.f32 %v156, 0.0
  %v189 = vmax.f32 %v157, 0.0
  %v190 = vmax.f32 %v158, 0.0
  %v191 = vmax.f32 %v159, 0.0
  %v192 = vmax.f32 %v160, 0.0
  %v193 = vmax.f32 %v161, 0.0
  %v194 = vmax.f32 %v162, 0.0
  %v195 = vmax.f32 %v163, 0.0
  %v196 = vmax.f32 %v164, 0.0
  %v197 = vmax.f32 %v165, 0.0
  %v198 = vmax.f32 %v166, 0.0
  %v199 = vmax.f32 %v167, 0.0
  %v200 = vmax.f32 %v168, 0.0
  %v201 = vmax.f32 %v169, 0.0
  %v202 = vmax.f32 %v170, 0.0
  %v203 = vmax.f32 %v171, 0.0
  %v204 = vmax.f32 %v172, 0.0
  %v205 = vmax.f32 %v173, 0.0
  %v206 = vmax.f32 %v174, 0.0
  %v207 = vmax.f32 %v175, 0.0
  %v208 = vmax.f32 %v176, 0.0
  %v209 = vmax.f32 %v177, 0.0
  %v210 = vmax.f32 %v178, 0.0
  %v211 = vmax.f32 %v179, 0.0
  %v212 = vmax.f32 %v180, 0.0
  %v213 = vmax.f32 %v181, 0.0
  %v214 = vmax.f32 %v182, 0.0
  %v215 = vmax.f32 %v183, 0.0
  %v216 = vmax.f32 %v184, 0.0
  %v217 = vmax.f32 %v185, 0.0
  %v218 = vld [vmem:[%s3] sm:$0xff]
  %v219 = vld [vmem:[%s3 + $0x8] sm:$0xff]
  %v220 = vld [vmem:[%s3 + $0x10] sm:$0xff]
  %v221 = vld [vmem:[%s3 + $0x18] sm:$0xff]
  %v222 = vld [vmem:[%s3 + $0x20] sm:$0xff]
  %v223 = vld [vmem:[%s3 + $0x28] sm:$0xff]
  %v224 = vld [vmem:[%s3 + $0x30] sm:$0xff]
  %v225 = vld [vmem:[%s3 + $0x38] sm:$0xff]
  %v226 = vld [vmem:[%s3 + $0x40] sm:$0xff]
  %v227 = vld [vmem:[%s3 + $0x48] sm:$0xff]
  %v228 = vld [vmem:[%s3 + $0x50] sm:$0xff]
  %v229 = vld [vmem:[%s3 + $0x58] sm:$0xff]
  %v230 = vld [vmem:[%s3 + $0x60] sm:$0xff]
  %v231 = vld [vmem:[%s3 + $0x68] sm:$0xff]
  %v232 = vld [vmem:[%s3 + $0x70] sm:$0xff]
  %v233 = vld [vmem:[%s3 + $0x78] sm:$0xff]
  %v234 = vld [vmem:[%s3 + $0x80] sm:$0xff]
  %v235 = vld [vmem:[%s3 + $0x88] sm:$0xff]
  %v236 = vld [vmem:[%s3 + $0x90] sm:$0xff]
  %v237 = vld [vmem:[%s3 + $0x98] sm:$0xff]
  %v238 = vld [vmem:[%s3 + $0xa0] sm:$0xff]
  %v239 = vld [vmem:[%s3 + $0xa8] sm:$0xff]
  %v240 = vld [vmem:[%s3 + $0xb0] sm:$0xff]
  %v241 = vld [vmem:[%s3 + $0xb8] sm:$0xff]
  %v242 = vld [vmem:[%s3 + $0xc0] sm:$0xff]
  %v243 = vld [vmem:[%s3 + $0xc8] sm:$0xff]
  %v244 = vld [vmem:[%s3 + $0xd0] sm:$0xff]
  %v245 = vld [vmem:[%s3 + $0xd8] sm:$0xff]
  %v246 = vld [vmem:[%s3 + $0xe0] sm:$0xff]
  %v247 = vld [vmem:[%s3 + $0xe8] sm:$0xff]
  %v248 = vld [vmem:[%s3 + $0xf0] sm:$0xff]
  %v249 = vld [vmem:[%s3 + $0xf8] sm:$0xff]
  %v250 = vld [vmem:[%s4] sm:$0x1]
  %v252 = vlaneseq
  %v253 = vshrl.u32 %v252, 7
  %v254 = vsub.s32 0, %v253
  %v255 = vrot.slane %v250, %v254
  %257 = vmatprep.subr.mxu0 0.0
  %258 = vmatpush1.msra.mxu0 %v218
  %259 = vmatprep.subr.mxu0 0.0
  %260 = vmatpush1.msra.mxu0 %v219
  %261 = vmatprep.subr.mxu0 0.0
  %262 = vmatpush1.msra.mxu0 %v220
  %263 = vmatprep.subr.mxu0 0.0
  %264 = vmatpush1.msra.mxu0 %v221
  %265 = vmatprep.subr.mxu0 0.0
  %266 = vmatpush1.msra.mxu0 %v222
  %267 = vmatprep.subr.mxu0 0.0
  %268 = vmatpush1.msra.mxu0 %v223
  %269 = vmatprep.subr.mxu0 0.0
  %270 = vmatpush1.msra.mxu0 %v224
  %271 = vmatprep.subr.mxu0 0.0
  %272 = vmatpush1.msra.mxu0 %v225
  %273 = vmatprep.subr.mxu0 0.0
  %274 = vmatpush1.msra.mxu0 %v226
  %275 = vmatprep.subr.mxu0 0.0
  %276 = vmatpush1.msra.mxu0 %v227
  %277 = vmatprep.subr.mxu0 0.0
  %278 = vmatpush1.msra.mxu0 %v228
  %279 = vmatprep.subr.mxu0 0.0
  %280 = vmatpush1.msra.mxu0 %v229
  %281 = vmatprep.subr.mxu0 0.0
  %282 = vmatpush1.msra.mxu0 %v230
  %283 = vmatprep.subr.mxu0 0.0
  %284 = vmatpush1.msra.mxu0 %v231
  %285 = vmatprep.subr.mxu0 0.0
  %286 = vmatpush1.msra.mxu0 %v232
  %287 = vmatprep.subr.mxu0 0.0
  %288 = vmatpush1.msra.mxu0 %v233
  %289 = vmatprep.subr.mxu0 0.0
  %290 = vmatpush1.msra.mxu0 %v234
  %291 = vmatprep.subr.mxu0 0.0
  %292 = vmatpush1.msra.mxu0 %v235
  %293 = vmatprep.subr.mxu0 0.0
  %294 = vmatpush1.msra.mxu0 %v236
  %295 = vmatprep.subr.mxu0 0.0
  %296 = vmatpush1.msra.mxu0 %v237
  %297 = vmatprep.subr.mxu0 0.0
  %298 = vmatpush1.msra.mxu0 %v238
  %299 = vmatprep.subr.mxu0 0.0
  %300 = vmatpush1.msra.mxu0 %v239
  %301 = vmatprep.subr.mxu0 0.0
  %302 = vmatpush1.msra.mxu0 %v240
  %303 = vmatprep.subr.mxu0 0.0
  %304 = vmatpush1.msra.mxu0 %v241
  %305 = vmatprep.subr.mxu0 0.0
  %306 = vmatpush1.msra.mxu0 %v242
  %307 = vmatprep.subr.mxu0 0.0
  %308 = vmatpush1.msra.mxu0 %v243
  %309 = vmatprep.subr.mxu0 0.0
  %310 = vmatpush1.msra.mxu0 %v244
  %311 = vmatprep.subr.mxu0 0.0
  %312 = vmatpush1.msra.mxu0 %v245
  %313 = vmatprep.subr.mxu0 0.0
  %314 = vmatpush1.msra.mxu0 %v246
  %315 = vmatprep.subr.mxu0 0.0
  %316 = vmatpush1.msra.mxu0 %v247
  %317 = vmatprep.subr.mxu0 0.0
  %318 = vmatpush1.msra.mxu0 %v248
  %319 = vmatprep.subr.mxu0 0.0
  %320 = vmatpush1.msra.mxu0 %v249
  %321 = vmatprep.mubr.f32.mxu0 %v187
  %322 = vmatmul.mubr.f32.gmra.mrb[0].mxu0 %v186
  %v323 = vpop.f32.mrb[0].mxu0
  %v324 = vadd.f32 %v255, %v323
  %v325 = vpop.f32.mrb[0].mxu0
  %326 = vmatprep.mubr.f32.mxu0 %v189
  %327 = vmatmul.mubr.f32.gmra.mrb[0].mxu0 %v188
  %v328 = vpop.f32.mrb[0].mxu0
  %v329 = vadd.f32 %v255, %v328
  %v330 = vpop.f32.mrb[0].mxu0
  %331 = vmatprep.mubr.f32.mxu0 %v191
  %332 = vmatmul.mubr.f32.gmra.mrb[0].mxu0 %v190
  %v333 = vpop.f32.mrb[0].mxu0
  %v334 = vadd.f32 %v255, %v333
  %v335 = vpop.f32.mrb[0].mxu0
  %336 = vmatprep.mubr.f32.mxu0 %v193
  %337 = vmatmul.mubr.f32.gmra.mrb[0].mxu0 %v192
  %v338 = vpop.f32.mrb[0].mxu0
  %v339 = vadd.f32 %v255, %v338
  %v340 = vpop.f32.mrb[0].mxu0
  %341 = vmatprep.mubr.f32.mxu0 %v195
  %342 = vmatmul.mubr.f32.gmra.mrb[0].mxu0 %v194
  %v343 = vpop.f32.mrb[0].mxu0
  %v344 = vadd.f32 %v255, %v343
  %v345 = vpop.f32.mrb[0].mxu0
  %346 = vmatprep.mubr.f32.mxu0 %v197
  %347 = vmatmul.mubr.f32.gmra.mrb[0].mxu0 %v196
  %v348 = vpop.f32.mrb[0].mxu0
  %v349 = vadd.f32 %v255, %v348
  %v350 = vpop.f32.mrb[0].mxu0
  %351 = vmatprep.mubr.f32.mxu0 %v199
  %352 = vmatmul.mubr.f32.gmra.mrb[0].mxu0 %v198
  %v353 = vpop.f32.mrb[0].mxu0
  %v354 = vadd.f32 %v255, %v353
  %v355 = vpop.f32.mrb[0].mxu0
  %356 = vmatprep.mubr.f32.mxu0 %v201
  %357 = vmatmul.mubr.f32.gmra.mrb[0].mxu0 %v200
  %v358 = vpop.f32.mrb[0].mxu0
  %v359 = vadd.f32 %v255, %v358
  %v360 = vpop.f32.mrb[0].mxu0
  %361 = vmatprep.mubr.f32.mxu0 %v203
  %362 = vmatmul.mubr.f32.gmra.mrb[0].mxu0 %v202
  %v363 = vpop.f32.mrb[0].mxu0
  %v364 = vadd.f32 %v255, %v363
  %v365 = vpop.f32.mrb[0].mxu0
  %366 = vmatprep.mubr.f32.mxu0 %v205
  %367 = vmatmul.mubr.f32.gmra.mrb[0].mxu0 %v204
  %v368 = vpop.f32.mrb[0].mxu0
  %v369 = vadd.f32 %v255, %v368
  %v370 = vpop.f32.mrb[0].mxu0
  %371 = vmatprep.mubr.f32.mxu0 %v207
  %372 = vmatmul.mubr.f32.gmra.mrb[0].mxu0 %v206
  %v373 = vpop.f32.mrb[0].mxu0
  %v374 = vadd.f32 %v255, %v373
  %v375 = vpop.f32.mrb[0].mxu0
  %376 = vmatprep.mubr.f32.mxu0 %v209
  %377 = vmatmul.mubr.f32.gmra.mrb[0].mxu0 %v208
  %v378 = vpop.f32.mrb[0].mxu0
  %v379 = vadd.f32 %v255, %v378
  %v380 = vpop.f32.mrb[0].mxu0
  %381 = vmatprep.mubr.f32.mxu0 %v211
  %382 = vmatmul.mubr.f32.gmra.mrb[0].mxu0 %v210
  %v383 = vpop.f32.mrb[0].mxu0
  %v384 = vadd.f32 %v255, %v383
  %v385 = vpop.f32.mrb[0].mxu0
  %386 = vmatprep.mubr.f32.mxu0 %v213
  %387 = vmatmul.mubr.f32.gmra.mrb[0].mxu0 %v212
  %v388 = vpop.f32.mrb[0].mxu0
  %v389 = vadd.f32 %v255, %v388
  %v390 = vpop.f32.mrb[0].mxu0
  %391 = vmatprep.mubr.f32.mxu0 %v215
  %392 = vmatmul.mubr.f32.gmra.mrb[0].mxu0 %v214
  %v393 = vpop.f32.mrb[0].mxu0
  %v394 = vadd.f32 %v255, %v393
  %v395 = vpop.f32.mrb[0].mxu0
  %396 = vmatprep.mubr.f32.mxu0 %v217
  %397 = vmatmul.mubr.f32.gmra.mrb[0].mxu0 %v216
  %v398 = vpop.f32.mrb[0].mxu0
  %v399 = vadd.f32 %v255, %v398
  %v400 = vpop.f32.mrb[0].mxu0
  %401 = vdwg.mxu0
  %v402 = vmax.f32 %v324, 0.0
  %v403 = vmax.f32 %v329, 0.0
  %v404 = vmax.f32 %v334, 0.0
  %v405 = vmax.f32 %v339, 0.0
  %v406 = vmax.f32 %v344, 0.0
  %v407 = vmax.f32 %v349, 0.0
  %v408 = vmax.f32 %v354, 0.0
  %v409 = vmax.f32 %v359, 0.0
  %v410 = vmax.f32 %v364, 0.0
  %v411 = vmax.f32 %v369, 0.0
  %v412 = vmax.f32 %v374, 0.0
  %v413 = vmax.f32 %v379, 0.0
  %v414 = vmax.f32 %v384, 0.0
  %v415 = vmax.f32 %v389, 0.0
  %v416 = vmax.f32 %v394, 0.0
  %v417 = vmax.f32 %v399, 0.0
  %418 = vmatprep.subr.mxu0 0.0
  %419 = vmatpush1.msra.mxu0 %v402
  %420 = vmatprep.subr.mxu0 0.0
  %421 = vmatpush1.msra.mxu0 %v403
  %422 = vmatprep.subr.mxu0 0.0
  %423 = vmatpush1.msra.mxu0 %v404
  %424 = vmatprep.subr.mxu0 0.0
  %425 = vmatpush1.msra.mxu0 %v405
  %426 = vmatprep.subr.mxu0 0.0
  %427 = vmatpush1.msra.mxu0 %v406
  %428 = vmatprep.subr.mxu0 0.0
  %429 = vmatpush1.msra.mxu0 %v407
  %430 = vmatprep.subr.mxu0 0.0
  %431 = vmatpush1.msra.mxu0 %v408
  %432 = vmatprep.subr.mxu0 0.0
  %433 = vmatpush1.msra.mxu0 %v409
  %434 = vmatprep.subr.mxu0 0.0
  %435 = vmatpush1.msra.mxu0 %v410
  %436 = vmatprep.subr.mxu0 0.0
  %437 = vmatpush1.msra.mxu0 %v411
  %438 = vmatprep.subr.mxu0 0.0
  %439 = vmatpush1.msra.mxu0 %v412
  %440 = vmatprep.subr.mxu0 0.0
  %441 = vmatpush1.msra.mxu0 %v413
  %442 = vmatprep.subr.mxu0 0.0
  %443 = vmatpush1.msra.mxu0 %v414
  %444 = vmatprep.subr.mxu0 0.0
  %445 = vmatpush1.msra.mxu0 %v415
  %446 = vmatprep.subr.mxu0 0.0
  %447 = vmatpush1.msra.mxu0 %v416
  %448 = vmatprep.subr.mxu0 0.0
  %449 = vmatpush1.msra.mxu0 %v417
  %450 = vmatprep.subr.mxu0 0.0
  %451 = vmatpush1.msra.mxu0 0.0
  %452 = vmatprep.subr.mxu0 0.0
  %453 = vmatpush1.msra.mxu0 0.0
  %454 = vmatprep.subr.mxu0 0.0
  %455 = vmatpush1.msra.mxu0 0.0
  %456 = vmatprep.subr.mxu0 0.0
  %457 = vmatpush1.msra.mxu0 0.0
  %458 = vmatprep.subr.mxu0 0.0
  %459 = vmatpush1.msra.mxu0 0.0
  %460 = vmatprep.subr.mxu0 0.0
  %461 = vmatpush1.msra.mxu0 0.0
  %462 = vmatprep.subr.mxu0 0.0
  %463 = vmatpush1.msra.mxu0 0.0
  %464 = vmatprep.subr.mxu0 0.0
  %465 = vmatpush1.msra.mxu0 0.0
  %466 = vmatprep.subr.mxu0 0.0
  %467 = vmatpush1.msra.mxu0 0.0
  %468 = vmatprep.subr.mxu0 0.0
  %469 = vmatpush1.msra.mxu0 0.0
  %470 = vmatprep.subr.mxu0 0.0
  %471 = vmatpush1.msra.mxu0 0.0
  %472 = vmatprep.subr.mxu0 0.0
  %473 = vmatpush1.msra.mxu0 0.0
  %474 = vmatprep.subr.mxu0 0.0
  %475 = vmatpush1.msra.mxu0 0.0
  %476 = vmatprep.subr.mxu0 0.0
  %477 = vmatpush1.msra.mxu0 0.0
  %478 = vmatprep.subr.mxu0 0.0
  %479 = vmatpush1.msra.mxu0 0.0
  %480 = vmatprep.subr.mxu0 0.0
  %481 = vmatpush1.msra.mxu0 0.0
  %482 = vmatprep.mubr.f32.mxu0 0.0
  %483 = vmatmul.mubr.f32.gmra.mrb[0].mxu0 %v50
  %v484 = vpop.f32.mrb[0].mxu0
  %v485 = vadd.f32 0.0, %v484
  %v486 = vpop.f32.mrb[0].mxu0
  %487 = vmatprep.mubr.f32.mxu0 0.0
  %488 = vmatmul.mubr.f32.gmra.mrb[0].mxu0 %v51
  %v489 = vpop.f32.mrb[0].mxu0
  %v490 = vadd.f32 0.0, %v489
  %v491 = vpop.f32.mrb[0].mxu0
  %492 = vmatprep.mubr.f32.mxu0 0.0
  %493 = vmatmul.mubr.f32.gmra.mrb[0].mxu0 %v52
  %v494 = vpop.f32.mrb[0].mxu0
  %v495 = vadd.f32 0.0, %v494
  %v496 = vpop.f32.mrb[0].mxu0
  %497 = vmatprep.mubr.f32.mxu0 0.0
  %498 = vmatmul.mubr.f32.gmra.mrb[0].mxu0 %v53
  %v499 = vpop.f32.mrb[0].mxu0
  %v500 = vadd.f32 0.0, %v499
  %v501 = vpop.f32.mrb[0].mxu0
  %502 = vmatprep.mubr.f32.mxu0 0.0
  %503 = vmatmul.mubr.f32.gmra.mrb[0].mxu0 %v54
  %v504 = vpop.f32.mrb[0].mxu0
  %v505 = vadd.f32 0.0, %v504
  %v506 = vpop.f32.mrb[0].mxu0
  %507 = vmatprep.mubr.f32.mxu0 0.0
  %508 = vmatmul.mubr.f32.gmra.mrb[0].mxu0 %v55
  %v509 = vpop.f32.mrb[0].mxu0
  %v510 = vadd.f32 0.0, %v509
  %v511 = vpop.f32.mrb[0].mxu0
  %512 = vmatprep.mubr.f32.mxu0 0.0
  %513 = vmatmul.mubr.f32.gmra.mrb[0].mxu0 %v56
  %v514 = vpop.f32.mrb[0].mxu0
  %v515 = vadd.f32 0.0, %v514
  %v516 = vpop.f32.mrb[0].mxu0
  %517 = vmatprep.mubr.f32.mxu0 0.0
  %518 = vmatmul.mubr.f32.gmra.mrb[0].mxu0 %v57
  %v519 = vpop.f32.mrb[0].mxu0
  %v520 = vadd.f32 0.0, %v519
  %v521 = vpop.f32.mrb[0].mxu0
  %522 = vmatprep.mubr.f32.mxu0 0.0
  %523 = vmatmul.mubr.f32.gmra.mrb[0].mxu0 %v58
  %v524 = vpop.f32.mrb[0].mxu0
  %v525 = vadd.f32 0.0, %v524
  %v526 = vpop.f32.mrb[0].mxu0
  %527 = vmatprep.mubr.f32.mxu0 0.0
  %528 = vmatmul.mubr.f32.gmra.mrb[0].mxu0 %v59
  %v529 = vpop.f32.mrb[0].mxu0
  %v530 = vadd.f32 0.0, %v529
  %v531 = vpop.f32.mrb[0].mxu0
  %532 = vmatprep.mubr.f32.mxu0 0.0
  %533 = vmatmul.mubr.f32.gmra.mrb[0].mxu0 %v60
  %v534 = vpop.f32.mrb[0].mxu0
  %v535 = vadd.f32 0.0, %v534
  %v536 = vpop.f32.mrb[0].mxu0
  %537 = vmatprep.mubr.f32.mxu0 0.0
  %538 = vmatmul.mubr.f32.gmra.mrb[0].mxu0 %v61
  %v539 = vpop.f32.mrb[0].mxu0
  %v540 = vadd.f32 0.0, %v539
  %v541 = vpop.f32.mrb[0].mxu0
  %542 = vmatprep.mubr.f32.mxu0 0.0
  %543 = vmatmul.mubr.f32.gmra.mrb[0].mxu0 %v62
  %v544 = vpop.f32.mrb[0].mxu0
  %v545 = vadd.f32 0.0, %v544
  %v546 = vpop.f32.mrb[0].mxu0
  %547 = vmatprep.mubr.f32.mxu0 0.0
  %548 = vmatmul.mubr.f32.gmra.mrb[0].mxu0 %v63
  %v549 = vpop.f32.mrb[0].mxu0
  %v550 = vadd.f32 0.0, %v549
  %v551 = vpop.f32.mrb[0].mxu0
  %552 = vmatprep.mubr.f32.mxu0 0.0
  %553 = vmatmul.mubr.f32.gmra.mrb[0].mxu0 %v64
  %v554 = vpop.f32.mrb[0].mxu0
  %v555 = vadd.f32 0.0, %v554
  %v556 = vpop.f32.mrb[0].mxu0
  %557 = vmatprep.mubr.f32.mxu0 0.0
  %558 = vmatmul.mubr.f32.gmra.mrb[0].mxu0 %v65
  %v559 = vpop.f32.mrb[0].mxu0
  %v560 = vadd.f32 0.0, %v559
  %v561 = vpop.f32.mrb[0].mxu0
  %562 = vdwg.mxu0
  %v563 = vld [vmem:[%s5] sm:$0xff]
  %v564 = vld [vmem:[%s5 + $0x8] sm:$0xff]
  %v565 = vld [vmem:[%s5 + $0x10] sm:$0xff]
  %v566 = vld [vmem:[%s5 + $0x18] sm:$0xff]
  %v567 = vld [vmem:[%s5 + $0x20] sm:$0xff]
  %v568 = vld [vmem:[%s5 + $0x28] sm:$0xff]
  %v569 = vld [vmem:[%s5 + $0x30] sm:$0xff]
  %v570 = vld [vmem:[%s5 + $0x38] sm:$0xff]
  %v571 = vld [vmem:[%s6] sm:$0x3]
  %v573 = vlaneseq
  %v574 = vshrl.u32 %v573, 7
  %v575 = vsub.s32 0, %v574
  %v576 = vrot.slane %v571, %v575
  %v577 = vlaneseq
  %v578 = vshrl.u32 %v577, 7
  %v579 = vsub.s32 1, %v578
  %v580 = vrot.slane %v571, %v579
  %vm583 = vcmask 261120
  %v585 = vsel %vm583, %v485, 0
  %v588 = vsel %vm583, %v490, 0
  %v591 = vsel %vm583, %v495, 0
  %v594 = vsel %vm583, %v500, 0
  %v597 = vsel %vm583, %v505, 0
  %v600 = vsel %vm583, %v510, 0
  %v603 = vsel %vm583, %v515, 0
  %v606 = vsel %vm583, %v520, 0
  %v609 = vsel %vm583, %v525, 0
  %v612 = vsel %vm583, %v530, 0
  %v615 = vsel %vm583, %v535, 0
  %v618 = vsel %vm583, %v540, 0
  %v621 = vsel %vm583, %v545, 0
  %v624 = vsel %vm583, %v550, 0
  %v627 = vsel %vm583, %v555, 0
  %v630 = vsel %vm583, %v560, 0
  %632 = vmatprep.subr.mxu0 %v564
  %633 = vmatpush1.msra.mxu0 %v563
  %634 = vmatprep.subr.mxu0 %v566
  %635 = vmatpush1.msra.mxu0 %v565
  %636 = vmatprep.subr.mxu0 %v568
  %637 = vmatpush1.msra.mxu0 %v567
  %638 = vmatprep.subr.mxu0 %v570
  %639 = vmatpush1.msra.mxu0 %v569
  %640 = vmatprep.subr.mxu0 0.0
  %641 = vmatpush1.msra.mxu0 0.0
  %642 = vmatprep.subr.mxu0 0.0
  %643 = vmatpush1.msra.mxu0 0.0
  %644 = vmatprep.subr.mxu0 0.0
  %645 = vmatpush1.msra.mxu0 0.0
  %646 = vmatprep.subr.mxu0 0.0
  %647 = vmatpush1.msra.mxu0 0.0
  %648 = vmatprep.subr.mxu0 0.0
  %649 = vmatpush1.msra.mxu0 0.0
  %650 = vmatprep.subr.mxu0 0.0
  %651 = vmatpush1.msra.mxu0 0.0
  %652 = vmatprep.subr.mxu0 0.0
  %653 = vmatpush1.msra.mxu0 0.0
  %654 = vmatprep.subr.mxu0 0.0
  %655 = vmatpush1.msra.mxu0 0.0
  %656 = vmatprep.subr.mxu0 0.0
  %657 = vmatpush1.msra.mxu0 0.0
  %658 = vmatprep.subr.mxu0 0.0
  %659 = vmatpush1.msra.mxu0 0.0
  %660 = vmatprep.subr.mxu0 0.0
  %661 = vmatpush1.msra.mxu0 0.0
  %662 = vmatprep.subr.mxu0 0.0
  %663 = vmatpush1.msra.mxu0 0.0
  %664 = vmatprep.subr.mxu0 0.0
  %665 = vmatpush1.msra.mxu0 0.0
  %666 = vmatprep.subr.mxu0 0.0
  %667 = vmatpush1.msra.mxu0 0.0
  %668 = vmatprep.subr.mxu0 0.0
  %669 = vmatpush1.msra.mxu0 0.0
  %670 = vmatprep.subr.mxu0 0.0
  %671 = vmatpush1.msra.mxu0 0.0
  %672 = vmatprep.subr.mxu0 0.0
  %673 = vmatpush1.msra.mxu0 0.0
  %674 = vmatprep.subr.mxu0 0.0
  %675 = vmatpush1.msra.mxu0 0.0
  %676 = vmatprep.subr.mxu0 0.0
  %677 = vmatpush1.msra.mxu0 0.0
  %678 = vmatprep.subr.mxu0 0.0
  %679 = vmatpush1.msra.mxu0 0.0
  %680 = vmatprep.subr.mxu0 0.0
  %681 = vmatpush1.msra.mxu0 0.0
  %682 = vmatprep.subr.mxu0 0.0
  %683 = vmatpush1.msra.mxu0 0.0
  %684 = vmatprep.subr.mxu0 0.0
  %685 = vmatpush1.msra.mxu0 0.0
  %686 = vmatprep.subr.mxu0 0.0
  %687 = vmatpush1.msra.mxu0 0.0
  %688 = vmatprep.subr.mxu0 0.0
  %689 = vmatpush1.msra.mxu0 0.0
  %690 = vmatprep.subr.mxu0 0.0
  %691 = vmatpush1.msra.mxu0 0.0
  %692 = vmatprep.subr.mxu0 0.0
  %693 = vmatpush1.msra.mxu0 0.0
  %694 = vmatprep.subr.mxu0 0.0
  %695 = vmatpush1.msra.mxu0 0.0
  %696 = vmatprep.mubr.f32.mxu0 0.0
  %697 = vmatmul.mubr.f32.gmra.mrb[0].mxu0 %v585
  %v698 = vpop.f32.mrb[0].mxu0
  %v699 = vadd.f32 %v576, %v698
  %v700 = vpop.f32.mrb[0].mxu0
  %v701 = vadd.f32 %v580, %v700
  %702 = vmatprep.mubr.f32.mxu0 0.0
  %703 = vmatmul.mubr.f32.gmra.mrb[0].mxu0 %v588
  %v704 = vpop.f32.mrb[0].mxu0
  %v705 = vadd.f32 %v576, %v704
  %v706 = vpop.f32.mrb[0].mxu0
  %v707 = vadd.f32 %v580, %v706
  %708 = vmatprep.mubr.f32.mxu0 0.0
  %709 = vmatmul.mubr.f32.gmra.mrb[0].mxu0 %v591
  %v710 = vpop.f32.mrb[0].mxu0
  %v711 = vadd.f32 %v576, %v710
  %v712 = vpop.f32.mrb[0].mxu0
  %v713 = vadd.f32 %v580, %v712
  %714 = vmatprep.mubr.f32.mxu0 0.0
  %715 = vmatmul.mubr.f32.gmra.mrb[0].mxu0 %v594
  %v716 = vpop.f32.mrb[0].mxu0
  %v717 = vadd.f32 %v576, %v716
  %v718 = vpop.f32.mrb[0].mxu0
  %v719 = vadd.f32 %v580, %v718
  %720 = vmatprep.mubr.f32.mxu0 0.0
  %721 = vmatmul.mubr.f32.gmra.mrb[0].mxu0 %v597
  %v722 = vpop.f32.mrb[0].mxu0
  %v723 = vadd.f32 %v576, %v722
  %v724 = vpop.f32.mrb[0].mxu0
  %v725 = vadd.f32 %v580, %v724
  %726 = vmatprep.mubr.f32.mxu0 0.0
  %727 = vmatmul.mubr.f32.gmra.mrb[0].mxu0 %v600
  %v728 = vpop.f32.mrb[0].mxu0
  %v729 = vadd.f32 %v576, %v728
  %v730 = vpop.f32.mrb[0].mxu0
  %v731 = vadd.f32 %v580, %v730
  %732 = vmatprep.mubr.f32.mxu0 0.0
  %733 = vmatmul.mubr.f32.gmra.mrb[0].mxu0 %v603
  %v734 = vpop.f32.mrb[0].mxu0
  %v735 = vadd.f32 %v576, %v734
  %v736 = vpop.f32.mrb[0].mxu0
  %v737 = vadd.f32 %v580, %v736
  %738 = vmatprep.mubr.f32.mxu0 0.0
  %739 = vmatmul.mubr.f32.gmra.mrb[0].mxu0 %v606
  %v740 = vpop.f32.mrb[0].mxu0
  %v741 = vadd.f32 %v576, %v740
  %v742 = vpop.f32.mrb[0].mxu0
  %v743 = vadd.f32 %v580, %v742
  %744 = vmatprep.mubr.f32.mxu0 0.0
  %745 = vmatmul.mubr.f32.gmra.mrb[0].mxu0 %v609
  %v746 = vpop.f32.mrb[0].mxu0
  %v747 = vadd.f32 %v576, %v746
  %v748 = vpop.f32.mrb[0].mxu0
  %v749 = vadd.f32 %v580, %v748
  %750 = vmatprep.mubr.f32.mxu0 0.0
  %751 = vmatmul.mubr.f32.gmra.mrb[0].mxu0 %v612
  %v752 = vpop.f32.mrb[0].mxu0
  %v753 = vadd.f32 %v576, %v752
  %v754 = vpop.f32.mrb[0].mxu0
  %v755 = vadd.f32 %v580, %v754
  %756 = vmatprep.mubr.f32.mxu0 0.0
  %757 = vmatmul.mubr.f32.gmra.mrb[0].mxu0 %v615
  %v758 = vpop.f32.mrb[0].mxu0
  %v759 = vadd.f32 %v576, %v758
  %v760 = vpop.f32.mrb[0].mxu0
  %v761 = vadd.f32 %v580, %v760
  %762 = vmatprep.mubr.f32.mxu0 0.0
  %763 = vmatmul.mubr.f32.gmra.mrb[0].mxu0 %v618
  %v764 = vpop.f32.mrb[0].mxu0
  %v765 = vadd.f32 %v576, %v764
  %v766 = vpop.f32.mrb[0].mxu0
  %v767 = vadd.f32 %v580, %v766
  %768 = vmatprep.mubr.f32.mxu0 0.0
  %769 = vmatmul.mubr.f32.gmra.mrb[0].mxu0 %v621
  %v770 = vpop.f32.mrb[0].mxu0
  %v771 = vadd.f32 %v576, %v770
  %v772 = vpop.f32.mrb[0].mxu0
  %v773 = vadd.f32 %v580, %v772
  %774 = vmatprep.mubr.f32.mxu0 0.0
  %775 = vmatmul.mubr.f32.gmra.mrb[0].mxu0 %v624
  %v776 = vpop.f32.mrb[0].mxu0
  %v777 = vadd.f32 %v576, %v776
  %v778 = vpop.f32.mrb[0].mxu0
  %v779 = vadd.f32 %v580, %v778
  %780 = vmatprep.mubr.f32.mxu0 0.0
  %781 = vmatmul.mubr.f32.gmra.mrb[0].mxu0 %v627
  %v782 = vpop.f32.mrb[0].mxu0
  %v783 = vadd.f32 %v576, %v782
  %v784 = vpop.f32.mrb[0].mxu0
  %v785 = vadd.f32 %v580, %v784
  %786 = vmatprep.mubr.f32.mxu0 0.0
  %787 = vmatmul.mubr.f32.gmra.mrb[0].mxu0 %v630
  %v788 = vpop.f32.mrb[0].mxu0
  %v789 = vadd.f32 %v576, %v788
  %v790 = vpop.f32.mrb[0].mxu0
  %v791 = vadd.f32 %v580, %v790
  %792 = vdwg.mxu0
  %v793 = vmax.f32 %v699, 0.0
  %v794 = vmax.f32 %v701, 0.0
  %v795 = vmax.f32 %v705, 0.0
  %v796 = vmax.f32 %v707, 0.0
  %v797 = vmax.f32 %v711, 0.0
  %v798 = vmax.f32 %v713, 0.0
  %v799 = vmax.f32 %v717, 0.0
  %v800 = vmax.f32 %v719, 0.0
  %v801 = vmax.f32 %v723, 0.0
  %v802 = vmax.f32 %v725, 0.0
  %v803 = vmax.f32 %v729, 0.0
  %v804 = vmax.f32 %v731, 0.0
  %v805 = vmax.f32 %v735, 0.0
  %v806 = vmax.f32 %v737, 0.0
  %v807 = vmax.f32 %v741, 0.0
  %v808 = vmax.f32 %v743, 0.0
  %v809 = vmax.f32 %v747, 0.0
  %v810 = vmax.f32 %v749, 0.0
  %v811 = vmax.f32 %v753, 0.0
  %v812 = vmax.f32 %v755, 0.0
  %v813 = vmax.f32 %v759, 0.0
  %v814 = vmax.f32 %v761, 0.0
  %v815 = vmax.f32 %v765, 0.0
  %v816 = vmax.f32 %v767, 0.0
  %v817 = vmax.f32 %v771, 0.0
  %v818 = vmax.f32 %v773, 0.0
  %v819 = vmax.f32 %v777, 0.0
  %v820 = vmax.f32 %v779, 0.0
  %v821 = vmax.f32 %v783, 0.0
  %v822 = vmax.f32 %v785, 0.0
  %v823 = vmax.f32 %v789, 0.0
  %v824 = vmax.f32 %v791, 0.0
  %v825 = vld [vmem:[%s7] sm:$0xff]
  %v826 = vld [vmem:[%s7 + $0x8] sm:$0xff]
  %v827 = vld [vmem:[%s7 + $0x10] sm:$0xff]
  %v828 = vld [vmem:[%s7 + $0x18] sm:$0xff]
  %v829 = vld [vmem:[%s7 + $0x20] sm:$0xff]
  %v830 = vld [vmem:[%s7 + $0x28] sm:$0xff]
  %v831 = vld [vmem:[%s7 + $0x30] sm:$0xff]
  %v832 = vld [vmem:[%s7 + $0x38] sm:$0xff]
  %v833 = vld [vmem:[%s7 + $0x40] sm:$0xff]
  %v834 = vld [vmem:[%s7 + $0x48] sm:$0xff]
  %v835 = vld [vmem:[%s7 + $0x50] sm:$0xff]
  %v836 = vld [vmem:[%s7 + $0x58] sm:$0xff]
  %v837 = vld [vmem:[%s7 + $0x60] sm:$0xff]
  %v838 = vld [vmem:[%s7 + $0x68] sm:$0xff]
  %v839 = vld [vmem:[%s7 + $0x70] sm:$0xff]
  %v840 = vld [vmem:[%s7 + $0x78] sm:$0xff]
  %v841 = vld [vmem:[%s7 + $0x80] sm:$0xff]
  %v842 = vld [vmem:[%s7 + $0x88] sm:$0xff]
  %v843 = vld [vmem:[%s7 + $0x90] sm:$0xff]
  %v844 = vld [vmem:[%s7 + $0x98] sm:$0xff]
  %v845 = vld [vmem:[%s7 + $0xa0] sm:$0xff]
  %v846 = vld [vmem:[%s7 + $0xa8] sm:$0xff]
  %v847 = vld [vmem:[%s7 + $0xb0] sm:$0xff]
  %v848 = vld [vmem:[%s7 + $0xb8] sm:$0xff]
  %v849 = vld [vmem:[%s7 + $0xc0] sm:$0xff]
  %v850 = vld [vmem:[%s7 + $0xc8] sm:$0xff]
  %v851 = vld [vmem:[%s7 + $0xd0] sm:$0xff]
  %v852 = vld [vmem:[%s7 + $0xd8] sm:$0xff]
  %v853 = vld [vmem:[%s7 + $0xe0] sm:$0xff]
  %v854 = vld [vmem:[%s7 + $0xe8] sm:$0xff]
  %v855 = vld [vmem:[%s7 + $0xf0] sm:$0xff]
  %v856 = vld [vmem:[%s7 + $0xf8] sm:$0xff]
  %v857 = vld [vmem:[%s8] sm:$0x1]
  %v859 = vlaneseq
  %v860 = vshrl.u32 %v859, 7
  %v861 = vsub.s32 0, %v860
  %v862 = vrot.slane %v857, %v861
  %864 = vmatprep.subr.mxu0 0.0
  %865 = vmatpush1.msra.mxu0 %v825
  %866 = vmatprep.subr.mxu0 0.0
  %867 = vmatpush1.msra.mxu0 %v826
  %868 = vmatprep.subr.mxu0 0.0
  %869 = vmatpush1.msra.mxu0 %v827
  %870 = vmatprep.subr.mxu0 0.0
  %871 = vmatpush1.msra.mxu0 %v828
  %872 = vmatprep.subr.mxu0 0.0
  %873 = vmatpush1.msra.mxu0 %v829
  %874 = vmatprep.subr.mxu0 0.0
  %875 = vmatpush1.msra.mxu0 %v830
  %876 = vmatprep.subr.mxu0 0.0
  %877 = vmatpush1.msra.mxu0 %v831
  %878 = vmatprep.subr.mxu0 0.0
  %879 = vmatpush1.msra.mxu0 %v832
  %880 = vmatprep.subr.mxu0 0.0
  %881 = vmatpush1.msra.mxu0 %v833
  %882 = vmatprep.subr.mxu0 0.0
  %883 = vmatpush1.msra.mxu0 %v834
  %884 = vmatprep.subr.mxu0 0.0
  %885 = vmatpush1.msra.mxu0 %v835
  %886 = vmatprep.subr.mxu0 0.0
  %887 = vmatpush1.msra.mxu0 %v836
  %888 = vmatprep.subr.mxu0 0.0
  %889 = vmatpush1.msra.mxu0 %v837
  %890 = vmatprep.subr.mxu0 0.0
  %891 = vmatpush1.msra.mxu0 %v838
  %892 = vmatprep.subr.mxu0 0.0
  %893 = vmatpush1.msra.mxu0 %v839
  %894 = vmatprep.subr.mxu0 0.0
  %895 = vmatpush1.msra.mxu0 %v840
  %896 = vmatprep.subr.mxu0 0.0
  %897 = vmatpush1.msra.mxu0 %v841
  %898 = vmatprep.subr.mxu0 0.0
  %899 = vmatpush1.msra.mxu0 %v842
  %900 = vmatprep.subr.mxu0 0.0
  %901 = vmatpush1.msra.mxu0 %v843
  %902 = vmatprep.subr.mxu0 0.0
  %903 = vmatpush1.msra.mxu0 %v844
  %904 = vmatprep.subr.mxu0 0.0
  %905 = vmatpush1.msra.mxu0 %v845
  %906 = vmatprep.subr.mxu0 0.0
  %907 = vmatpush1.msra.mxu0 %v846
  %908 = vmatprep.subr.mxu0 0.0
  %909 = vmatpush1.msra.mxu0 %v847
  %910 = vmatprep.subr.mxu0 0.0
  %911 = vmatpush1.msra.mxu0 %v848
  %912 = vmatprep.subr.mxu0 0.0
  %913 = vmatpush1.msra.mxu0 %v849
  %914 = vmatprep.subr.mxu0 0.0
  %915 = vmatpush1.msra.mxu0 %v850
  %916 = vmatprep.subr.mxu0 0.0
  %917 = vmatpush1.msra.mxu0 %v851
  %918 = vmatprep.subr.mxu0 0.0
  %919 = vmatpush1.msra.mxu0 %v852
  %920 = vmatprep.subr.mxu0 0.0
  %921 = vmatpush1.msra.mxu0 %v853
  %922 = vmatprep.subr.mxu0 0.0
  %923 = vmatpush1.msra.mxu0 %v854
  %924 = vmatprep.subr.mxu0 0.0
  %925 = vmatpush1.msra.mxu0 %v855
  %926 = vmatprep.subr.mxu0 0.0
  %927 = vmatpush1.msra.mxu0 %v856
  %928 = vmatprep.mubr.f32.mxu0 %v794
  %929 = vmatmul.mubr.f32.gmra.mrb[0].mxu0 %v793
  %v930 = vpop.f32.mrb[0].mxu0
  %v931 = vadd.f32 %v862, %v930
  %v932 = vpop.f32.mrb[0].mxu0
  %933 = vmatprep.mubr.f32.mxu0 %v796
  %934 = vmatmul.mubr.f32.gmra.mrb[0].mxu0 %v795
  %v935 = vpop.f32.mrb[0].mxu0
  %v936 = vadd.f32 %v862, %v935
  %v937 = vpop.f32.mrb[0].mxu0
  %938 = vmatprep.mubr.f32.mxu0 %v798
  %939 = vmatmul.mubr.f32.gmra.mrb[0].mxu0 %v797
  %v940 = vpop.f32.mrb[0].mxu0
  %v941 = vadd.f32 %v862, %v940
  %v942 = vpop.f32.mrb[0].mxu0
  %943 = vmatprep.mubr.f32.mxu0 %v800
  %944 = vmatmul.mubr.f32.gmra.mrb[0].mxu0 %v799
  %v945 = vpop.f32.mrb[0].mxu0
  %v946 = vadd.f32 %v862, %v945
  %v947 = vpop.f32.mrb[0].mxu0
  %948 = vmatprep.mubr.f32.mxu0 %v802
  %949 = vmatmul.mubr.f32.gmra.mrb[0].mxu0 %v801
  %v950 = vpop.f32.mrb[0].mxu0
  %v951 = vadd.f32 %v862, %v950
  %v952 = vpop.f32.mrb[0].mxu0
  %953 = vmatprep.mubr.f32.mxu0 %v804
  %954 = vmatmul.mubr.f32.gmra.mrb[0].mxu0 %v803
  %v955 = vpop.f32.mrb[0].mxu0
  %v956 = vadd.f32 %v862, %v955
  %v957 = vpop.f32.mrb[0].mxu0
  %958 = vmatprep.mubr.f32.mxu0 %v806
  %959 = vmatmul.mubr.f32.gmra.mrb[0].mxu0 %v805
  %v960 = vpop.f32.mrb[0].mxu0
  %v961 = vadd.f32 %v862, %v960
  %v962 = vpop.f32.mrb[0].mxu0
  %963 = vmatprep.mubr.f32.mxu0 %v808
  %964 = vmatmul.mubr.f32.gmra.mrb[0].mxu0 %v807
  %v965 = vpop.f32.mrb[0].mxu0
  %v966 = vadd.f32 %v862, %v965
  %v967 = vpop.f32.mrb[0].mxu0
  %968 = vmatprep.mubr.f32.mxu0 %v810
  %969 = vmatmul.mubr.f32.gmra.mrb[0].mxu0 %v809
  %v970 = vpop.f32.mrb[0].mxu0
  %v971 = vadd.f32 %v862, %v970
  %v972 = vpop.f32.mrb[0].mxu0
  %973 = vmatprep.mubr.f32.mxu0 %v812
  %974 = vmatmul.mubr.f32.gmra.mrb[0].mxu0 %v811
  %v975 = vpop.f32.mrb[0].mxu0
  %v976 = vadd.f32 %v862, %v975
  %v977 = vpop.f32.mrb[0].mxu0
  %978 = vmatprep.mubr.f32.mxu0 %v814
  %979 = vmatmul.mubr.f32.gmra.mrb[0].mxu0 %v813
  %v980 = vpop.f32.mrb[0].mxu0
  %v981 = vadd.f32 %v862, %v980
  %v982 = vpop.f32.mrb[0].mxu0
  %983 = vmatprep.mubr.f32.mxu0 %v816
  %984 = vmatmul.mubr.f32.gmra.mrb[0].mxu0 %v815
  %v985 = vpop.f32.mrb[0].mxu0
  %v986 = vadd.f32 %v862, %v985
  %v987 = vpop.f32.mrb[0].mxu0
  %988 = vmatprep.mubr.f32.mxu0 %v818
  %989 = vmatmul.mubr.f32.gmra.mrb[0].mxu0 %v817
  %v990 = vpop.f32.mrb[0].mxu0
  %v991 = vadd.f32 %v862, %v990
  %v992 = vpop.f32.mrb[0].mxu0
  %993 = vmatprep.mubr.f32.mxu0 %v820
  %994 = vmatmul.mubr.f32.gmra.mrb[0].mxu0 %v819
  %v995 = vpop.f32.mrb[0].mxu0
  %v996 = vadd.f32 %v862, %v995
  %v997 = vpop.f32.mrb[0].mxu0
  %998 = vmatprep.mubr.f32.mxu0 %v822
  %999 = vmatmul.mubr.f32.gmra.mrb[0].mxu0 %v821
  %v1000 = vpop.f32.mrb[0].mxu0
  %v1001 = vadd.f32 %v862, %v1000
  %v1002 = vpop.f32.mrb[0].mxu0
  %1003 = vmatprep.mubr.f32.mxu0 %v824
  %1004 = vmatmul.mubr.f32.gmra.mrb[0].mxu0 %v823
  %v1005 = vpop.f32.mrb[0].mxu0
  %v1006 = vadd.f32 %v862, %v1005
  %v1007 = vpop.f32.mrb[0].mxu0
  %1008 = vdwg.mxu0
  %v1009 = vmax.f32 %v931, 0.0
  %v1010 = vmax.f32 %v936, 0.0
  %v1011 = vmax.f32 %v941, 0.0
  %v1012 = vmax.f32 %v946, 0.0
  %v1013 = vmax.f32 %v951, 0.0
  %v1014 = vmax.f32 %v956, 0.0
  %v1015 = vmax.f32 %v961, 0.0
  %v1016 = vmax.f32 %v966, 0.0
  %v1017 = vmax.f32 %v971, 0.0
  %v1018 = vmax.f32 %v976, 0.0
  %v1019 = vmax.f32 %v981, 0.0
  %v1020 = vmax.f32 %v986, 0.0
  %v1021 = vmax.f32 %v991, 0.0
  %v1022 = vmax.f32 %v996, 0.0
  %v1023 = vmax.f32 %v1001, 0.0
  %v1024 = vmax.f32 %v1006, 0.0
  %1025 = vmatprep.subr.mxu0 0.0
  %1026 = vmatpush1.msra.mxu0 %v1009
  %1027 = vmatprep.subr.mxu0 0.0
  %1028 = vmatpush1.msra.mxu0 %v1010
  %1029 = vmatprep.subr.mxu0 0.0
  %1030 = vmatpush1.msra.mxu0 %v1011
  %1031 = vmatprep.subr.mxu0 0.0
  %1032 = vmatpush1.msra.mxu0 %v1012
  %1033 = vmatprep.subr.mxu0 0.0
  %1034 = vmatpush1.msra.mxu0 %v1013
  %1035 = vmatprep.subr.mxu0 0.0
  %1036 = vmatpush1.msra.mxu0 %v1014
  %1037 = vmatprep.subr.mxu0 0.0
  %1038 = vmatpush1.msra.mxu0 %v1015
  %1039 = vmatprep.subr.mxu0 0.0
  %1040 = vmatpush1.msra.mxu0 %v1016
  %1041 = vmatprep.subr.mxu0 0.0
  %1042 = vmatpush1.msra.mxu0 %v1017
  %1043 = vmatprep.subr.mxu0 0.0
  %1044 = vmatpush1.msra.mxu0 %v1018
  %1045 = vmatprep.subr.mxu0 0.0
  %1046 = vmatpush1.msra.mxu0 %v1019
  %1047 = vmatprep.subr.mxu0 0.0
  %1048 = vmatpush1.msra.mxu0 %v1020
  %1049 = vmatprep.subr.mxu0 0.0
  %1050 = vmatpush1.msra.mxu0 %v1021
  %1051 = vmatprep.subr.mxu0 0.0
  %1052 = vmatpush1.msra.mxu0 %v1022
  %1053 = vmatprep.subr.mxu0 0.0
  %1054 = vmatpush1.msra.mxu0 %v1023
  %1055 = vmatprep.subr.mxu0 0.0
  %1056 = vmatpush1.msra.mxu0 %v1024
  %1057 = vmatprep.subr.mxu0 0.0
  %1058 = vmatpush1.msra.mxu0 0.0
  %1059 = vmatprep.subr.mxu0 0.0
  %1060 = vmatpush1.msra.mxu0 0.0
  %1061 = vmatprep.subr.mxu0 0.0
  %1062 = vmatpush1.msra.mxu0 0.0
  %1063 = vmatprep.subr.mxu0 0.0
  %1064 = vmatpush1.msra.mxu0 0.0
  %1065 = vmatprep.subr.mxu0 0.0
  %1066 = vmatpush1.msra.mxu0 0.0
  %1067 = vmatprep.subr.mxu0 0.0
  %1068 = vmatpush1.msra.mxu0 0.0
  %1069 = vmatprep.subr.mxu0 0.0
  %1070 = vmatpush1.msra.mxu0 0.0
  %1071 = vmatprep.subr.mxu0 0.0
  %1072 = vmatpush1.msra.mxu0 0.0
  %1073 = vmatprep.subr.mxu0 0.0
  %1074 = vmatpush1.msra.mxu0 0.0
  %1075 = vmatprep.subr.mxu0 0.0
  %1076 = vmatpush1.msra.mxu0 0.0
  %1077 = vmatprep.subr.mxu0 0.0
  %1078 = vmatpush1.msra.mxu0 0.0
  %1079 = vmatprep.subr.mxu0 0.0
  %1080 = vmatpush1.msra.mxu0 0.0
  %1081 = vmatprep.subr.mxu0 0.0
  %1082 = vmatpush1.msra.mxu0 0.0
  %1083 = vmatprep.subr.mxu0 0.0
  %1084 = vmatpush1.msra.mxu0 0.0
  %1085 = vmatprep.subr.mxu0 0.0
  %1086 = vmatpush1.msra.mxu0 0.0
  %1087 = vmatprep.subr.mxu0 0.0
  %1088 = vmatpush1.msra.mxu0 0.0
  %1089 = vmatprep.mubr.f32.mxu0 0.0
  %1090 = vmatmul.mubr.f32.gmra.mrb[0].mxu0 %v50
  %v1091 = vpop.f32.mrb[0].mxu0
  %v1092 = vadd.f32 0.0, %v1091
  %v1093 = vpop.f32.mrb[0].mxu0
  %1094 = vmatprep.mubr.f32.mxu0 0.0
  %1095 = vmatmul.mubr.f32.gmra.mrb[0].mxu0 %v51
  %v1096 = vpop.f32.mrb[0].mxu0
  %v1097 = vadd.f32 0.0, %v1096
  %v1098 = vpop.f32.mrb[0].mxu0
  %1099 = vmatprep.mubr.f32.mxu0 0.0
  %1100 = vmatmul.mubr.f32.gmra.mrb[0].mxu0 %v52
  %v1101 = vpop.f32.mrb[0].mxu0
  %v1102 = vadd.f32 0.0, %v1101
  %v1103 = vpop.f32.mrb[0].mxu0
  %1104 = vmatprep.mubr.f32.mxu0 0.0
  %1105 = vmatmul.mubr.f32.gmra.mrb[0].mxu0 %v53
  %v1106 = vpop.f32.mrb[0].mxu0
  %v1107 = vadd.f32 0.0, %v1106
  %v1108 = vpop.f32.mrb[0].mxu0
  %1109 = vmatprep.mubr.f32.mxu0 0.0
  %1110 = vmatmul.mubr.f32.gmra.mrb[0].mxu0 %v54
  %v1111 = vpop.f32.mrb[0].mxu0
  %v1112 = vadd.f32 0.0, %v1111
  %v1113 = vpop.f32.mrb[0].mxu0
  %1114 = vmatprep.mubr.f32.mxu0 0.0
  %1115 = vmatmul.mubr.f32.gmra.mrb[0].mxu0 %v55
  %v1116 = vpop.f32.mrb[0].mxu0
  %v1117 = vadd.f32 0.0, %v1116
  %v1118 = vpop.f32.mrb[0].mxu0
  %1119 = vmatprep.mubr.f32.mxu0 0.0
  %1120 = vmatmul.mubr.f32.gmra.mrb[0].mxu0 %v56
  %v1121 = vpop.f32.mrb[0].mxu0
  %v1122 = vadd.f32 0.0, %v1121
  %v1123 = vpop.f32.mrb[0].mxu0
  %1124 = vmatprep.mubr.f32.mxu0 0.0
  %1125 = vmatmul.mubr.f32.gmra.mrb[0].mxu0 %v57
  %v1126 = vpop.f32.mrb[0].mxu0
  %v1127 = vadd.f32 0.0, %v1126
  %v1128 = vpop.f32.mrb[0].mxu0
  %1129 = vmatprep.mubr.f32.mxu0 0.0
  %1130 = vmatmul.mubr.f32.gmra.mrb[0].mxu0 %v58
  %v1131 = vpop.f32.mrb[0].mxu0
  %v1132 = vadd.f32 0.0, %v1131
  %v1133 = vpop.f32.mrb[0].mxu0
  %1134 = vmatprep.mubr.f32.mxu0 0.0
  %1135 = vmatmul.mubr.f32.gmra.mrb[0].mxu0 %v59
  %v1136 = vpop.f32.mrb[0].mxu0
  %v1137 = vadd.f32 0.0, %v1136
  %v1138 = vpop.f32.mrb[0].mxu0
  %1139 = vmatprep.mubr.f32.mxu0 0.0
  %1140 = vmatmul.mubr.f32.gmra.mrb[0].mxu0 %v60
  %v1141 = vpop.f32.mrb[0].mxu0
  %v1142 = vadd.f32 0.0, %v1141
  %v1143 = vpop.f32.mrb[0].mxu0
  %1144 = vmatprep.mubr.f32.mxu0 0.0
  %1145 = vmatmul.mubr.f32.gmra.mrb[0].mxu0 %v61
  %v1146 = vpop.f32.mrb[0].mxu0
  %v1147 = vadd.f32 0.0, %v1146
  %v1148 = vpop.f32.mrb[0].mxu0
  %1149 = vmatprep.mubr.f32.mxu0 0.0
  %1150 = vmatmul.mubr.f32.gmra.mrb[0].mxu0 %v62
  %v1151 = vpop.f32.mrb[0].mxu0
  %v1152 = vadd.f32 0.0, %v1151
  %v1153 = vpop.f32.mrb[0].mxu0
  %1154 = vmatprep.mubr.f32.mxu0 0.0
  %1155 = vmatmul.mubr.f32.gmra.mrb[0].mxu0 %v63
  %v1156 = vpop.f32.mrb[0].mxu0
  %v1157 = vadd.f32 0.0, %v1156
  %v1158 = vpop.f32.mrb[0].mxu0
  %1159 = vmatprep.mubr.f32.mxu0 0.0
  %1160 = vmatmul.mubr.f32.gmra.mrb[0].mxu0 %v64
  %v1161 = vpop.f32.mrb[0].mxu0
  %v1162 = vadd.f32 0.0, %v1161
  %v1163 = vpop.f32.mrb[0].mxu0
  %1164 = vmatprep.mubr.f32.mxu0 0.0
  %1165 = vmatmul.mubr.f32.gmra.mrb[0].mxu0 %v65
  %v1166 = vpop.f32.mrb[0].mxu0
  %v1167 = vadd.f32 0.0, %v1166
  %v1168 = vpop.f32.mrb[0].mxu0
  %1169 = vdwg.mxu0
  %v1170 = vld [vmem:[%s9] sm:$0xff]
  %v1171 = vld [vmem:[%s9 + $0x8] sm:$0xff]
  %v1172 = vld [vmem:[%s9 + $0x10] sm:$0xff]
  %v1173 = vld [vmem:[%s9 + $0x18] sm:$0xff]
  %v1174 = vld [vmem:[%s9 + $0x20] sm:$0xff]
  %v1175 = vld [vmem:[%s9 + $0x28] sm:$0xff]
  %v1176 = vld [vmem:[%s9 + $0x30] sm:$0xff]
  %v1177 = vld [vmem:[%s9 + $0x38] sm:$0xff]
  %v1178 = vld [vmem:[%s10] sm:$0x3]
  %v1180 = vlaneseq
  %v1181 = vshrl.u32 %v1180, 7
  %v1182 = vsub.s32 0, %v1181
  %v1183 = vrot.slane %v1178, %v1182
  %v1184 = vlaneseq
  %v1185 = vshrl.u32 %v1184, 7
  %v1186 = vsub.s32 1, %v1185
  %v1187 = vrot.slane %v1178, %v1186
  %v1191 = vsel %vm583, %v1092, 0
  %v1194 = vsel %vm583, %v1097, 0
  %v1197 = vsel %vm583, %v1102, 0
  %v1200 = vsel %vm583, %v1107, 0
  %v1203 = vsel %vm583, %v1112, 0
  %v1206 = vsel %vm583, %v1117, 0
  %v1209 = vsel %vm583, %v1122, 0
  %v1212 = vsel %vm583, %v1127, 0
  %v1215 = vsel %vm583, %v1132, 0
  %v1218 = vsel %vm583, %v1137, 0
  %v1221 = vsel %vm583, %v1142, 0
  %v1224 = vsel %vm583, %v1147, 0
  %v1227 = vsel %vm583, %v1152, 0
  %v1230 = vsel %vm583, %v1157, 0
  %v1233 = vsel %vm583, %v1162, 0
  %v1236 = vsel %vm583, %v1167, 0
  %1238 = vmatprep.subr.mxu0 %v1171
  %1239 = vmatpush1.msra.mxu0 %v1170
  %1240 = vmatprep.subr.mxu0 %v1173
  %1241 = vmatpush1.msra.mxu0 %v1172
  %1242 = vmatprep.subr.mxu0 %v1175
  %1243 = vmatpush1.msra.mxu0 %v1174
  %1244 = vmatprep.subr.mxu0 %v1177
  %1245 = vmatpush1.msra.mxu0 %v1176
  %1246 = vmatprep.subr.mxu0 0.0
  %1247 = vmatpush1.msra.mxu0 0.0
  %1248 = vmatprep.subr.mxu0 0.0
  %1249 = vmatpush1.msra.mxu0 0.0
  %1250 = vmatprep.subr.mxu0 0.0
  %1251 = vmatpush1.msra.mxu0 0.0
  %1252 = vmatprep.subr.mxu0 0.0
  %1253 = vmatpush1.msra.mxu0 0.0
  %1254 = vmatprep.subr.mxu0 0.0
  %1255 = vmatpush1.msra.mxu0 0.0
  %1256 = vmatprep.subr.mxu0 0.0
  %1257 = vmatpush1.msra.mxu0 0.0
  %1258 = vmatprep.subr.mxu0 0.0
  %1259 = vmatpush1.msra.mxu0 0.0
  %1260 = vmatprep.subr.mxu0 0.0
  %1261 = vmatpush1.msra.mxu0 0.0
  %1262 = vmatprep.subr.mxu0 0.0
  %1263 = vmatpush1.msra.mxu0 0.0
  %1264 = vmatprep.subr.mxu0 0.0
  %1265 = vmatpush1.msra.mxu0 0.0
  %1266 = vmatprep.subr.mxu0 0.0
  %1267 = vmatpush1.msra.mxu0 0.0
  %1268 = vmatprep.subr.mxu0 0.0
  %1269 = vmatpush1.msra.mxu0 0.0
  %1270 = vmatprep.subr.mxu0 0.0
  %1271 = vmatpush1.msra.mxu0 0.0
  %1272 = vmatprep.subr.mxu0 0.0
  %1273 = vmatpush1.msra.mxu0 0.0
  %1274 = vmatprep.subr.mxu0 0.0
  %1275 = vmatpush1.msra.mxu0 0.0
  %1276 = vmatprep.subr.mxu0 0.0
  %1277 = vmatpush1.msra.mxu0 0.0
  %1278 = vmatprep.subr.mxu0 0.0
  %1279 = vmatpush1.msra.mxu0 0.0
  %1280 = vmatprep.subr.mxu0 0.0
  %1281 = vmatpush1.msra.mxu0 0.0
  %1282 = vmatprep.subr.mxu0 0.0
  %1283 = vmatpush1.msra.mxu0 0.0
  %1284 = vmatprep.subr.mxu0 0.0
  %1285 = vmatpush1.msra.mxu0 0.0
  %1286 = vmatprep.subr.mxu0 0.0
  %1287 = vmatpush1.msra.mxu0 0.0
  %1288 = vmatprep.subr.mxu0 0.0
  %1289 = vmatpush1.msra.mxu0 0.0
  %1290 = vmatprep.subr.mxu0 0.0
  %1291 = vmatpush1.msra.mxu0 0.0
  %1292 = vmatprep.subr.mxu0 0.0
  %1293 = vmatpush1.msra.mxu0 0.0
  %1294 = vmatprep.subr.mxu0 0.0
  %1295 = vmatpush1.msra.mxu0 0.0
  %1296 = vmatprep.subr.mxu0 0.0
  %1297 = vmatpush1.msra.mxu0 0.0
  %1298 = vmatprep.subr.mxu0 0.0
  %1299 = vmatpush1.msra.mxu0 0.0
  %1300 = vmatprep.subr.mxu0 0.0
  %1301 = vmatpush1.msra.mxu0 0.0
  %1302 = vmatprep.mubr.f32.mxu0 0.0
  %1303 = vmatmul.mubr.f32.gmra.mrb[0].mxu0 %v1191
  %v1304 = vpop.f32.mrb[0].mxu0
  %v1305 = vadd.f32 %v1183, %v1304
  %v1306 = vpop.f32.mrb[0].mxu0
  %v1307 = vadd.f32 %v1187, %v1306
  %1308 = vmatprep.mubr.f32.mxu0 0.0
  %1309 = vmatmul.mubr.f32.gmra.mrb[0].mxu0 %v1194
  %v1310 = vpop.f32.mrb[0].mxu0
  %v1311 = vadd.f32 %v1183, %v1310
  %v1312 = vpop.f32.mrb[0].mxu0
  %v1313 = vadd.f32 %v1187, %v1312
  %1314 = vmatprep.mubr.f32.mxu0 0.0
  %1315 = vmatmul.mubr.f32.gmra.mrb[0].mxu0 %v1197
  %v1316 = vpop.f32.mrb[0].mxu0
  %v1317 = vadd.f32 %v1183, %v1316
  %v1318 = vpop.f32.mrb[0].mxu0
  %v1319 = vadd.f32 %v1187, %v1318
  %1320 = vmatprep.mubr.f32.mxu0 0.0
  %1321 = vmatmul.mubr.f32.gmra.mrb[0].mxu0 %v1200
  %v1322 = vpop.f32.mrb[0].mxu0
  %v1323 = vadd.f32 %v1183, %v1322
  %v1324 = vpop.f32.mrb[0].mxu0
  %v1325 = vadd.f32 %v1187, %v1324
  %1326 = vmatprep.mubr.f32.mxu0 0.0
  %1327 = vmatmul.mubr.f32.gmra.mrb[0].mxu0 %v1203
  %v1328 = vpop.f32.mrb[0].mxu0
  %v1329 = vadd.f32 %v1183, %v1328
  %v1330 = vpop.f32.mrb[0].mxu0
  %v1331 = vadd.f32 %v1187, %v1330
  %1332 = vmatprep.mubr.f32.mxu0 0.0
  %1333 = vmatmul.mubr.f32.gmra.mrb[0].mxu0 %v1206
  %v1334 = vpop.f32.mrb[0].mxu0
  %v1335 = vadd.f32 %v1183, %v1334
  %v1336 = vpop.f32.mrb[0].mxu0
  %v1337 = vadd.f32 %v1187, %v1336
  %1338 = vmatprep.mubr.f32.mxu0 0.0
  %1339 = vmatmul.mubr.f32.gmra.mrb[0].mxu0 %v1209
  %v1340 = vpop.f32.mrb[0].mxu0
  %v1341 = vadd.f32 %v1183, %v1340
  %v1342 = vpop.f32.mrb[0].mxu0
  %v1343 = vadd.f32 %v1187, %v1342
  %1344 = vmatprep.mubr.f32.mxu0 0.0
  %1345 = vmatmul.mubr.f32.gmra.mrb[0].mxu0 %v1212
  %v1346 = vpop.f32.mrb[0].mxu0
  %v1347 = vadd.f32 %v1183, %v1346
  %v1348 = vpop.f32.mrb[0].mxu0
  %v1349 = vadd.f32 %v1187, %v1348
  %1350 = vmatprep.mubr.f32.mxu0 0.0
  %1351 = vmatmul.mubr.f32.gmra.mrb[0].mxu0 %v1215
  %v1352 = vpop.f32.mrb[0].mxu0
  %v1353 = vadd.f32 %v1183, %v1352
  %v1354 = vpop.f32.mrb[0].mxu0
  %v1355 = vadd.f32 %v1187, %v1354
  %1356 = vmatprep.mubr.f32.mxu0 0.0
  %1357 = vmatmul.mubr.f32.gmra.mrb[0].mxu0 %v1218
  %v1358 = vpop.f32.mrb[0].mxu0
  %v1359 = vadd.f32 %v1183, %v1358
  %v1360 = vpop.f32.mrb[0].mxu0
  %v1361 = vadd.f32 %v1187, %v1360
  %1362 = vmatprep.mubr.f32.mxu0 0.0
  %1363 = vmatmul.mubr.f32.gmra.mrb[0].mxu0 %v1221
  %v1364 = vpop.f32.mrb[0].mxu0
  %v1365 = vadd.f32 %v1183, %v1364
  %v1366 = vpop.f32.mrb[0].mxu0
  %v1367 = vadd.f32 %v1187, %v1366
  %1368 = vmatprep.mubr.f32.mxu0 0.0
  %1369 = vmatmul.mubr.f32.gmra.mrb[0].mxu0 %v1224
  %v1370 = vpop.f32.mrb[0].mxu0
  %v1371 = vadd.f32 %v1183, %v1370
  %v1372 = vpop.f32.mrb[0].mxu0
  %v1373 = vadd.f32 %v1187, %v1372
  %1374 = vmatprep.mubr.f32.mxu0 0.0
  %1375 = vmatmul.mubr.f32.gmra.mrb[0].mxu0 %v1227
  %v1376 = vpop.f32.mrb[0].mxu0
  %v1377 = vadd.f32 %v1183, %v1376
  %v1378 = vpop.f32.mrb[0].mxu0
  %v1379 = vadd.f32 %v1187, %v1378
  %1380 = vmatprep.mubr.f32.mxu0 0.0
  %1381 = vmatmul.mubr.f32.gmra.mrb[0].mxu0 %v1230
  %v1382 = vpop.f32.mrb[0].mxu0
  %v1383 = vadd.f32 %v1183, %v1382
  %v1384 = vpop.f32.mrb[0].mxu0
  %v1385 = vadd.f32 %v1187, %v1384
  %1386 = vmatprep.mubr.f32.mxu0 0.0
  %1387 = vmatmul.mubr.f32.gmra.mrb[0].mxu0 %v1233
  %v1388 = vpop.f32.mrb[0].mxu0
  %v1389 = vadd.f32 %v1183, %v1388
  %v1390 = vpop.f32.mrb[0].mxu0
  %v1391 = vadd.f32 %v1187, %v1390
  %1392 = vmatprep.mubr.f32.mxu0 0.0
  %1393 = vmatmul.mubr.f32.gmra.mrb[0].mxu0 %v1236
  %v1394 = vpop.f32.mrb[0].mxu0
  %v1395 = vadd.f32 %v1183, %v1394
  %v1396 = vpop.f32.mrb[0].mxu0
  %v1397 = vadd.f32 %v1187, %v1396
  %1398 = vdwg.mxu0
  %v1399 = vmax.f32 %v1305, 0.0
  %v1400 = vmax.f32 %v1307, 0.0
  %v1401 = vmax.f32 %v1311, 0.0
  %v1402 = vmax.f32 %v1313, 0.0
  %v1403 = vmax.f32 %v1317, 0.0
  %v1404 = vmax.f32 %v1319, 0.0
  %v1405 = vmax.f32 %v1323, 0.0
  %v1406 = vmax.f32 %v1325, 0.0
  %v1407 = vmax.f32 %v1329, 0.0
  %v1408 = vmax.f32 %v1331, 0.0
  %v1409 = vmax.f32 %v1335, 0.0
  %v1410 = vmax.f32 %v1337, 0.0
  %v1411 = vmax.f32 %v1341, 0.0
  %v1412 = vmax.f32 %v1343, 0.0
  %v1413 = vmax.f32 %v1347, 0.0
  %v1414 = vmax.f32 %v1349, 0.0
  %v1415 = vmax.f32 %v1353, 0.0
  %v1416 = vmax.f32 %v1355, 0.0
  %v1417 = vmax.f32 %v1359, 0.0
  %v1418 = vmax.f32 %v1361, 0.0
  %v1419 = vmax.f32 %v1365, 0.0
  %v1420 = vmax.f32 %v1367, 0.0
  %v1421 = vmax.f32 %v1371, 0.0
  %v1422 = vmax.f32 %v1373, 0.0
  %v1423 = vmax.f32 %v1377, 0.0
  %v1424 = vmax.f32 %v1379, 0.0
  %v1425 = vmax.f32 %v1383, 0.0
  %v1426 = vmax.f32 %v1385, 0.0
  %v1427 = vmax.f32 %v1389, 0.0
  %v1428 = vmax.f32 %v1391, 0.0
  %v1429 = vmax.f32 %v1395, 0.0
  %v1430 = vmax.f32 %v1397, 0.0
  %v1431 = vld [vmem:[%s11] sm:$0xff]
  %v1432 = vld [vmem:[%s11 + $0x8] sm:$0xff]
  %v1433 = vld [vmem:[%s11 + $0x10] sm:$0xff]
  %v1434 = vld [vmem:[%s11 + $0x18] sm:$0xff]
  %v1435 = vld [vmem:[%s11 + $0x20] sm:$0xff]
  %v1436 = vld [vmem:[%s11 + $0x28] sm:$0xff]
  %v1437 = vld [vmem:[%s11 + $0x30] sm:$0xff]
  %v1438 = vld [vmem:[%s11 + $0x38] sm:$0xff]
  %v1439 = vld [vmem:[%s11 + $0x40] sm:$0xff]
  %v1440 = vld [vmem:[%s11 + $0x48] sm:$0xff]
  %v1441 = vld [vmem:[%s11 + $0x50] sm:$0xff]
  %v1442 = vld [vmem:[%s11 + $0x58] sm:$0xff]
  %v1443 = vld [vmem:[%s11 + $0x60] sm:$0xff]
  %v1444 = vld [vmem:[%s11 + $0x68] sm:$0xff]
  %v1445 = vld [vmem:[%s11 + $0x70] sm:$0xff]
  %v1446 = vld [vmem:[%s11 + $0x78] sm:$0xff]
  %v1447 = vld [vmem:[%s11 + $0x80] sm:$0xff]
  %v1448 = vld [vmem:[%s11 + $0x88] sm:$0xff]
  %v1449 = vld [vmem:[%s11 + $0x90] sm:$0xff]
  %v1450 = vld [vmem:[%s11 + $0x98] sm:$0xff]
  %v1451 = vld [vmem:[%s11 + $0xa0] sm:$0xff]
  %v1452 = vld [vmem:[%s11 + $0xa8] sm:$0xff]
  %v1453 = vld [vmem:[%s11 + $0xb0] sm:$0xff]
  %v1454 = vld [vmem:[%s11 + $0xb8] sm:$0xff]
  %v1455 = vld [vmem:[%s11 + $0xc0] sm:$0xff]
  %v1456 = vld [vmem:[%s11 + $0xc8] sm:$0xff]
  %v1457 = vld [vmem:[%s11 + $0xd0] sm:$0xff]
  %v1458 = vld [vmem:[%s11 + $0xd8] sm:$0xff]
  %v1459 = vld [vmem:[%s11 + $0xe0] sm:$0xff]
  %v1460 = vld [vmem:[%s11 + $0xe8] sm:$0xff]
  %v1461 = vld [vmem:[%s11 + $0xf0] sm:$0xff]
  %v1462 = vld [vmem:[%s11 + $0xf8] sm:$0xff]
  %v1463 = vld [vmem:[%s12] sm:$0x1]
  %v1465 = vlaneseq
  %v1466 = vshrl.u32 %v1465, 7
  %v1467 = vsub.s32 0, %v1466
  %v1468 = vrot.slane %v1463, %v1467
  %1470 = vmatprep.subr.mxu0 0.0
  %1471 = vmatpush1.msra.mxu0 %v1431
  %1472 = vmatprep.subr.mxu0 0.0
  %1473 = vmatpush1.msra.mxu0 %v1432
  %1474 = vmatprep.subr.mxu0 0.0
  %1475 = vmatpush1.msra.mxu0 %v1433
  %1476 = vmatprep.subr.mxu0 0.0
  %1477 = vmatpush1.msra.mxu0 %v1434
  %1478 = vmatprep.subr.mxu0 0.0
  %1479 = vmatpush1.msra.mxu0 %v1435
  %1480 = vmatprep.subr.mxu0 0.0
  %1481 = vmatpush1.msra.mxu0 %v1436
  %1482 = vmatprep.subr.mxu0 0.0
  %1483 = vmatpush1.msra.mxu0 %v1437
  %1484 = vmatprep.subr.mxu0 0.0
  %1485 = vmatpush1.msra.mxu0 %v1438
  %1486 = vmatprep.subr.mxu0 0.0
  %1487 = vmatpush1.msra.mxu0 %v1439
  %1488 = vmatprep.subr.mxu0 0.0
  %1489 = vmatpush1.msra.mxu0 %v1440
  %1490 = vmatprep.subr.mxu0 0.0
  %1491 = vmatpush1.msra.mxu0 %v1441
  %1492 = vmatprep.subr.mxu0 0.0
  %1493 = vmatpush1.msra.mxu0 %v1442
  %1494 = vmatprep.subr.mxu0 0.0
  %1495 = vmatpush1.msra.mxu0 %v1443
  %1496 = vmatprep.subr.mxu0 0.0
  %1497 = vmatpush1.msra.mxu0 %v1444
  %1498 = vmatprep.subr.mxu0 0.0
  %1499 = vmatpush1.msra.mxu0 %v1445
  %1500 = vmatprep.subr.mxu0 0.0
  %1501 = vmatpush1.msra.mxu0 %v1446
  %1502 = vmatprep.subr.mxu0 0.0
  %1503 = vmatpush1.msra.mxu0 %v1447
  %1504 = vmatprep.subr.mxu0 0.0
  %1505 = vmatpush1.msra.mxu0 %v1448
  %1506 = vmatprep.subr.mxu0 0.0
  %1507 = vmatpush1.msra.mxu0 %v1449
  %1508 = vmatprep.subr.mxu0 0.0
  %1509 = vmatpush1.msra.mxu0 %v1450
  %1510 = vmatprep.subr.mxu0 0.0
  %1511 = vmatpush1.msra.mxu0 %v1451
  %1512 = vmatprep.subr.mxu0 0.0
  %1513 = vmatpush1.msra.mxu0 %v1452
  %1514 = vmatprep.subr.mxu0 0.0
  %1515 = vmatpush1.msra.mxu0 %v1453
  %1516 = vmatprep.subr.mxu0 0.0
  %1517 = vmatpush1.msra.mxu0 %v1454
  %1518 = vmatprep.subr.mxu0 0.0
  %1519 = vmatpush1.msra.mxu0 %v1455
  %1520 = vmatprep.subr.mxu0 0.0
  %1521 = vmatpush1.msra.mxu0 %v1456
  %1522 = vmatprep.subr.mxu0 0.0
  %1523 = vmatpush1.msra.mxu0 %v1457
  %1524 = vmatprep.subr.mxu0 0.0
  %1525 = vmatpush1.msra.mxu0 %v1458
  %1526 = vmatprep.subr.mxu0 0.0
  %1527 = vmatpush1.msra.mxu0 %v1459
  %1528 = vmatprep.subr.mxu0 0.0
  %1529 = vmatpush1.msra.mxu0 %v1460
  %1530 = vmatprep.subr.mxu0 0.0
  %1531 = vmatpush1.msra.mxu0 %v1461
  %1532 = vmatprep.subr.mxu0 0.0
  %1533 = vmatpush1.msra.mxu0 %v1462
  %1534 = vmatprep.mubr.f32.mxu0 %v1400
  %1535 = vmatmul.mubr.f32.gmra.mrb[0].mxu0 %v1399
  %v1536 = vpop.f32.mrb[0].mxu0
  %v1537 = vadd.f32 %v1468, %v1536
  %v1538 = vpop.f32.mrb[0].mxu0
  %1539 = vmatprep.mubr.f32.mxu0 %v1402
  %1540 = vmatmul.mubr.f32.gmra.mrb[0].mxu0 %v1401
  %v1541 = vpop.f32.mrb[0].mxu0
  %v1542 = vadd.f32 %v1468, %v1541
  %v1543 = vpop.f32.mrb[0].mxu0
  %1544 = vmatprep.mubr.f32.mxu0 %v1404
  %1545 = vmatmul.mubr.f32.gmra.mrb[0].mxu0 %v1403
  %v1546 = vpop.f32.mrb[0].mxu0
  %v1547 = vadd.f32 %v1468, %v1546
  %v1548 = vpop.f32.mrb[0].mxu0
  %1549 = vmatprep.mubr.f32.mxu0 %v1406
  %1550 = vmatmul.mubr.f32.gmra.mrb[0].mxu0 %v1405
  %v1551 = vpop.f32.mrb[0].mxu0
  %v1552 = vadd.f32 %v1468, %v1551
  %v1553 = vpop.f32.mrb[0].mxu0
  %1554 = vmatprep.mubr.f32.mxu0 %v1408
  %1555 = vmatmul.mubr.f32.gmra.mrb[0].mxu0 %v1407
  %v1556 = vpop.f32.mrb[0].mxu0
  %v1557 = vadd.f32 %v1468, %v1556
  %v1558 = vpop.f32.mrb[0].mxu0
  %1559 = vmatprep.mubr.f32.mxu0 %v1410
  %1560 = vmatmul.mubr.f32.gmra.mrb[0].mxu0 %v1409
  %v1561 = vpop.f32.mrb[0].mxu0
  %v1562 = vadd.f32 %v1468, %v1561
  %v1563 = vpop.f32.mrb[0].mxu0
  %1564 = vmatprep.mubr.f32.mxu0 %v1412
  %1565 = vmatmul.mubr.f32.gmra.mrb[0].mxu0 %v1411
  %v1566 = vpop.f32.mrb[0].mxu0
  %v1567 = vadd.f32 %v1468, %v1566
  %v1568 = vpop.f32.mrb[0].mxu0
  %1569 = vmatprep.mubr.f32.mxu0 %v1414
  %1570 = vmatmul.mubr.f32.gmra.mrb[0].mxu0 %v1413
  %v1571 = vpop.f32.mrb[0].mxu0
  %v1572 = vadd.f32 %v1468, %v1571
  %v1573 = vpop.f32.mrb[0].mxu0
  %1574 = vmatprep.mubr.f32.mxu0 %v1416
  %1575 = vmatmul.mubr.f32.gmra.mrb[0].mxu0 %v1415
  %v1576 = vpop.f32.mrb[0].mxu0
  %v1577 = vadd.f32 %v1468, %v1576
  %v1578 = vpop.f32.mrb[0].mxu0
  %1579 = vmatprep.mubr.f32.mxu0 %v1418
  %1580 = vmatmul.mubr.f32.gmra.mrb[0].mxu0 %v1417
  %v1581 = vpop.f32.mrb[0].mxu0
  %v1582 = vadd.f32 %v1468, %v1581
  %v1583 = vpop.f32.mrb[0].mxu0
  %1584 = vmatprep.mubr.f32.mxu0 %v1420
  %1585 = vmatmul.mubr.f32.gmra.mrb[0].mxu0 %v1419
  %v1586 = vpop.f32.mrb[0].mxu0
  %v1587 = vadd.f32 %v1468, %v1586
  %v1588 = vpop.f32.mrb[0].mxu0
  %1589 = vmatprep.mubr.f32.mxu0 %v1422
  %1590 = vmatmul.mubr.f32.gmra.mrb[0].mxu0 %v1421
  %v1591 = vpop.f32.mrb[0].mxu0
  %v1592 = vadd.f32 %v1468, %v1591
  %v1593 = vpop.f32.mrb[0].mxu0
  %1594 = vmatprep.mubr.f32.mxu0 %v1424
  %1595 = vmatmul.mubr.f32.gmra.mrb[0].mxu0 %v1423
  %v1596 = vpop.f32.mrb[0].mxu0
  %v1597 = vadd.f32 %v1468, %v1596
  %v1598 = vpop.f32.mrb[0].mxu0
  %1599 = vmatprep.mubr.f32.mxu0 %v1426
  %1600 = vmatmul.mubr.f32.gmra.mrb[0].mxu0 %v1425
  %v1601 = vpop.f32.mrb[0].mxu0
  %v1602 = vadd.f32 %v1468, %v1601
  %v1603 = vpop.f32.mrb[0].mxu0
  %1604 = vmatprep.mubr.f32.mxu0 %v1428
  %1605 = vmatmul.mubr.f32.gmra.mrb[0].mxu0 %v1427
  %v1606 = vpop.f32.mrb[0].mxu0
  %v1607 = vadd.f32 %v1468, %v1606
  %v1608 = vpop.f32.mrb[0].mxu0
  %1609 = vmatprep.mubr.f32.mxu0 %v1430
  %1610 = vmatmul.mubr.f32.gmra.mrb[0].mxu0 %v1429
  %v1611 = vpop.f32.mrb[0].mxu0
  %v1612 = vadd.f32 %v1468, %v1611
  %v1613 = vpop.f32.mrb[0].mxu0
  %1614 = vdwg.mxu0
  %v1615 = vmax.f32 %v1537, 0.0
  %v1616 = vmax.f32 %v1542, 0.0
  %v1617 = vmax.f32 %v1547, 0.0
  %v1618 = vmax.f32 %v1552, 0.0
  %v1619 = vmax.f32 %v1557, 0.0
  %v1620 = vmax.f32 %v1562, 0.0
  %v1621 = vmax.f32 %v1567, 0.0
  %v1622 = vmax.f32 %v1572, 0.0
  %v1623 = vmax.f32 %v1577, 0.0
  %v1624 = vmax.f32 %v1582, 0.0
  %v1625 = vmax.f32 %v1587, 0.0
  %v1626 = vmax.f32 %v1592, 0.0
  %v1627 = vmax.f32 %v1597, 0.0
  %v1628 = vmax.f32 %v1602, 0.0
  %v1629 = vmax.f32 %v1607, 0.0
  %v1630 = vmax.f32 %v1612, 0.0
  %v1631 = vld [vmem:[%s13] sm:$0xff]
  %v1632 = vld [vmem:[%s13 + $0x8] sm:$0xff]
  %v1633 = vld [vmem:[%s13 + $0x10] sm:$0xff]
  %v1634 = vld [vmem:[%s13 + $0x18] sm:$0xff]
  %v1635 = vld [vmem:[%s14] sm:$0x1]
  %v1637 = vlaneseq
  %v1638 = vshrl.u32 %v1637, 7
  %v1639 = vsub.s32 0, %v1638
  %v1640 = vrot.slane %v1635, %v1639
  %v1643 = vsel %vm583, %v1615, 0
  %v1646 = vsel %vm583, %v1616, 0
  %v1649 = vsel %vm583, %v1617, 0
  %v1652 = vsel %vm583, %v1618, 0
  %v1655 = vsel %vm583, %v1619, 0
  %v1658 = vsel %vm583, %v1620, 0
  %v1661 = vsel %vm583, %v1621, 0
  %v1664 = vsel %vm583, %v1622, 0
  %v1667 = vsel %vm583, %v1623, 0
  %v1670 = vsel %vm583, %v1624, 0
  %v1673 = vsel %vm583, %v1625, 0
  %v1676 = vsel %vm583, %v1626, 0
  %v1679 = vsel %vm583, %v1627, 0
  %v1682 = vsel %vm583, %v1628, 0
  %v1685 = vsel %vm583, %v1629, 0
  %v1688 = vsel %vm583, %v1630, 0
  %1690 = vmatprep.subr.mxu0 0.0
  %1691 = vmatpush1.msra.mxu0 %v1631
  %1692 = vmatprep.subr.mxu0 0.0
  %1693 = vmatpush1.msra.mxu0 %v1632
  %1694 = vmatprep.subr.mxu0 0.0
  %1695 = vmatpush1.msra.mxu0 %v1633
  %1696 = vmatprep.subr.mxu0 0.0
  %1697 = vmatpush1.msra.mxu0 %v1634
  %1698 = vmatprep.subr.mxu0 0.0
  %1699 = vmatpush1.msra.mxu0 0.0
  %1700 = vmatprep.subr.mxu0 0.0
  %1701 = vmatpush1.msra.mxu0 0.0
  %1702 = vmatprep.subr.mxu0 0.0
  %1703 = vmatpush1.msra.mxu0 0.0
  %1704 = vmatprep.subr.mxu0 0.0
  %1705 = vmatpush1.msra.mxu0 0.0
  %1706 = vmatprep.subr.mxu0 0.0
  %1707 = vmatpush1.msra.mxu0 0.0
  %1708 = vmatprep.subr.mxu0 0.0
  %1709 = vmatpush1.msra.mxu0 0.0
  %1710 = vmatprep.subr.mxu0 0.0
  %1711 = vmatpush1.msra.mxu0 0.0
  %1712 = vmatprep.subr.mxu0 0.0
  %1713 = vmatpush1.msra.mxu0 0.0
  %1714 = vmatprep.subr.mxu0 0.0
  %1715 = vmatpush1.msra.mxu0 0.0
  %1716 = vmatprep.subr.mxu0 0.0
  %1717 = vmatpush1.msra.mxu0 0.0
  %1718 = vmatprep.subr.mxu0 0.0
  %1719 = vmatpush1.msra.mxu0 0.0
  %1720 = vmatprep.subr.mxu0 0.0
  %1721 = vmatpush1.msra.mxu0 0.0
  %1722 = vmatprep.subr.mxu0 0.0
  %1723 = vmatpush1.msra.mxu0 0.0
  %1724 = vmatprep.subr.mxu0 0.0
  %1725 = vmatpush1.msra.mxu0 0.0
  %1726 = vmatprep.subr.mxu0 0.0
  %1727 = vmatpush1.msra.mxu0 0.0
  %1728 = vmatprep.subr.mxu0 0.0
  %1729 = vmatpush1.msra.mxu0 0.0
  %1730 = vmatprep.subr.mxu0 0.0
  %1731 = vmatpush1.msra.mxu0 0.0
  %1732 = vmatprep.subr.mxu0 0.0
  %1733 = vmatpush1.msra.mxu0 0.0
  %1734 = vmatprep.subr.mxu0 0.0
  %1735 = vmatpush1.msra.mxu0 0.0
  %1736 = vmatprep.subr.mxu0 0.0
  %1737 = vmatpush1.msra.mxu0 0.0
  %1738 = vmatprep.subr.mxu0 0.0
  %1739 = vmatpush1.msra.mxu0 0.0
  %1740 = vmatprep.subr.mxu0 0.0
  %1741 = vmatpush1.msra.mxu0 0.0
  %1742 = vmatprep.subr.mxu0 0.0
  %1743 = vmatpush1.msra.mxu0 0.0
  %1744 = vmatprep.subr.mxu0 0.0
  %1745 = vmatpush1.msra.mxu0 0.0
  %1746 = vmatprep.subr.mxu0 0.0
  %1747 = vmatpush1.msra.mxu0 0.0
  %1748 = vmatprep.subr.mxu0 0.0
  %1749 = vmatpush1.msra.mxu0 0.0
  %1750 = vmatprep.subr.mxu0 0.0
  %1751 = vmatpush1.msra.mxu0 0.0
  %1752 = vmatprep.subr.mxu0 0.0
  %1753 = vmatpush1.msra.mxu0 0.0
  %1754 = vmatprep.mubr.f32.mxu0 0.0
  %1755 = vmatmul.mubr.f32.gmra.mrb[0].mxu0 %v1643
  %v1756 = vpop.f32.mrb[0].mxu0
  %v1757 = vadd.f32 %v1640, %v1756
  %v1758 = vpop.f32.mrb[0].mxu0
  %1759 = vmatprep.mubr.f32.mxu0 0.0
  %1760 = vmatmul.mubr.f32.gmra.mrb[0].mxu0 %v1646
  %v1761 = vpop.f32.mrb[0].mxu0
  %v1762 = vadd.f32 %v1640, %v1761
  %v1763 = vpop.f32.mrb[0].mxu0
  %1764 = vmatprep.mubr.f32.mxu0 0.0
  %1765 = vmatmul.mubr.f32.gmra.mrb[0].mxu0 %v1649
  %v1766 = vpop.f32.mrb[0].mxu0
  %v1767 = vadd.f32 %v1640, %v1766
  %v1768 = vpop.f32.mrb[0].mxu0
  %1769 = vmatprep.mubr.f32.mxu0 0.0
  %1770 = vmatmul.mubr.f32.gmra.mrb[0].mxu0 %v1652
  %v1771 = vpop.f32.mrb[0].mxu0
  %v1772 = vadd.f32 %v1640, %v1771
  %v1773 = vpop.f32.mrb[0].mxu0
  %1774 = vmatprep.mubr.f32.mxu0 0.0
  %1775 = vmatmul.mubr.f32.gmra.mrb[0].mxu0 %v1655
  %v1776 = vpop.f32.mrb[0].mxu0
  %v1777 = vadd.f32 %v1640, %v1776
  %v1778 = vpop.f32.mrb[0].mxu0
  %1779 = vmatprep.mubr.f32.mxu0 0.0
  %1780 = vmatmul.mubr.f32.gmra.mrb[0].mxu0 %v1658
  %v1781 = vpop.f32.mrb[0].mxu0
  %v1782 = vadd.f32 %v1640, %v1781
  %v1783 = vpop.f32.mrb[0].mxu0
  %1784 = vmatprep.mubr.f32.mxu0 0.0
  %1785 = vmatmul.mubr.f32.gmra.mrb[0].mxu0 %v1661
  %v1786 = vpop.f32.mrb[0].mxu0
  %v1787 = vadd.f32 %v1640, %v1786
  %v1788 = vpop.f32.mrb[0].mxu0
  %1789 = vmatprep.mubr.f32.mxu0 0.0
  %1790 = vmatmul.mubr.f32.gmra.mrb[0].mxu0 %v1664
  %v1791 = vpop.f32.mrb[0].mxu0
  %v1792 = vadd.f32 %v1640, %v1791
  %v1793 = vpop.f32.mrb[0].mxu0
  %1794 = vmatprep.mubr.f32.mxu0 0.0
  %1795 = vmatmul.mubr.f32.gmra.mrb[0].mxu0 %v1667
  %v1796 = vpop.f32.mrb[0].mxu0
  %v1797 = vadd.f32 %v1640, %v1796
  %v1798 = vpop.f32.mrb[0].mxu0
  %1799 = vmatprep.mubr.f32.mxu0 0.0
  %1800 = vmatmul.mubr.f32.gmra.mrb[0].mxu0 %v1670
  %v1801 = vpop.f32.mrb[0].mxu0
  %v1802 = vadd.f32 %v1640, %v1801
  %v1803 = vpop.f32.mrb[0].mxu0
  %1804 = vmatprep.mubr.f32.mxu0 0.0
  %1805 = vmatmul.mubr.f32.gmra.mrb[0].mxu0 %v1673
  %v1806 = vpop.f32.mrb[0].mxu0
  %v1807 = vadd.f32 %v1640, %v1806
  %v1808 = vpop.f32.mrb[0].mxu0
  %1809 = vmatprep.mubr.f32.mxu0 0.0
  %1810 = vmatmul.mubr.f32.gmra.mrb[0].mxu0 %v1676
  %v1811 = vpop.f32.mrb[0].mxu0
  %v1812 = vadd.f32 %v1640, %v1811
  %v1813 = vpop.f32.mrb[0].mxu0
  %1814 = vmatprep.mubr.f32.mxu0 0.0
  %1815 = vmatmul.mubr.f32.gmra.mrb[0].mxu0 %v1679
  %v1816 = vpop.f32.mrb[0].mxu0
  %v1817 = vadd.f32 %v1640, %v1816
  %v1818 = vpop.f32.mrb[0].mxu0
  %1819 = vmatprep.mubr.f32.mxu0 0.0
  %1820 = vmatmul.mubr.f32.gmra.mrb[0].mxu0 %v1682
  %v1821 = vpop.f32.mrb[0].mxu0
  %v1822 = vadd.f32 %v1640, %v1821
  %v1823 = vpop.f32.mrb[0].mxu0
  %1824 = vmatprep.mubr.f32.mxu0 0.0
  %1825 = vmatmul.mubr.f32.gmra.mrb[0].mxu0 %v1685
  %v1826 = vpop.f32.mrb[0].mxu0
  %v1827 = vadd.f32 %v1640, %v1826
  %v1828 = vpop.f32.mrb[0].mxu0
  %1829 = vmatprep.mubr.f32.mxu0 0.0
  %1830 = vmatmul.mubr.f32.gmra.mrb[0].mxu0 %v1688
  %v1831 = vpop.f32.mrb[0].mxu0
  %v1832 = vadd.f32 %v1640, %v1831
  %v1833 = vpop.f32.mrb[0].mxu0
  %1834 = vdwg.mxu0
  %1835 = vst [vmem:[%s15] sm:$0xff] %v1757
  %1836 = vst [vmem:[%s15 + $0x8] sm:$0xff] %v1762
  %1837 = vst [vmem:[%s15 + $0x10] sm:$0xff] %v1767
  %1838 = vst [vmem:[%s15 + $0x18] sm:$0xff] %v1772
  %1839 = vst [vmem:[%s15 + $0x20] sm:$0xff] %v1777
  %1840 = vst [vmem:[%s15 + $0x28] sm:$0xff] %v1782
  %1841 = vst [vmem:[%s15 + $0x30] sm:$0xff] %v1787
  %1842 = vst [vmem:[%s15 + $0x38] sm:$0xff] %v1792
  %1843 = vst [vmem:[%s15 + $0x40] sm:$0xff] %v1797
  %1844 = vst [vmem:[%s15 + $0x48] sm:$0xff] %v1802
  %1845 = vst [vmem:[%s15 + $0x50] sm:$0xff] %v1807
  %1846 = vst [vmem:[%s15 + $0x58] sm:$0xff] %v1812
  %1847 = vst [vmem:[%s15 + $0x60] sm:$0xff] %v1817
  %1848 = vst [vmem:[%s15 + $0x68] sm:$0xff] %v1822
  %1849 = vst [vmem:[%s15 + $0x70] sm:$0xff] %v1827
  %1850 = vst [vmem:[%s15 + $0x78] sm:$0xff] %v1832
  // Predicated region
  $region62: #{lognet_forward.1} parent=0 // pred_check
    _
  $region63: #{lognet_forward.1} parent=0 // pred_check_branch
    %1852 = sbr.rel (0) target = $region65
  $region64: #{lognet_forward.1} parent=0 // pred_region
    _
  $region65: #{lognet_forward.1} parent=0 // pred_fallthru
    _
  // Predicated region
  $region66: #{lognet_forward.1} parent=0 // pred_check
    _
  $region67: #{lognet_forward.1} parent=0 // pred_check_branch
    %1854 = sbr.rel (0) target = $region69
  $region68: #{lognet_forward.1} parent=0 // pred_region
    _
  $region69: #{lognet_forward.1} parent=0 // pred_fallthru
    _

</llo_original>
